<compile_context>
chip_gen: v7x
topology: tpu7x:2x2x1
jax: 0.10.0
libtpu: 0.0.40
codegen_flags: <defaults>
</compile_context>

<pallas_src>
import functools

import jax
import jax.numpy as jnp
import numpy as np
from jax.experimental import pallas as pl
from jax.experimental.pallas import tpu as pltpu

EPS = 1e-5
NEG_SLOPE = 0.2


def _lrelu(v):
    return jnp.where(v >= 0, v, NEG_SLOPE * v)


def _round_up(v, m):
    return (v + m - 1) // m * m


def _vmem_limit_bytes():
    """Generation-aware scoped-VMEM budget (~3/4 of physical, clamped)."""
    try:
        cap = int(pltpu.get_tpu_info().vmem_capacity_bytes)
    except Exception:  # pragma: no cover - conservative fallback
        cap = 64 * 1024 * 1024
    return int(min(96 * 2**20, max(32 * 2**20, (3 * cap) // 4)))


def _choose_tiling(B, NK, Ci, Cf, Co, vmem_limit):
    """Pick (bb, T, NK_pad): batch block, lane tile, padded point count."""
    NK_pad = _round_up(NK, 128)

    # Pass-2 per-(batch x lane) footprint estimate (f32 words):
    #   double-buffered y/x inputs + double-buffered bf16 output +
    #   h/a/out f32 intermediates + wbig.
    words_per_lane = 2 * (Cf + Ci) + Co + 3 * Co + Ci * Co
    bytes_per_lane = 4 * words_per_lane
    budget = vmem_limit // 2                       # headroom for temporaries
    max_lanes = max(128, (budget // bytes_per_lane) // 128 * 128)

    # Largest multiple-of-128 lane tile that divides NK_pad and fits.
    t_cap = min(8192, max_lanes, NK_pad)
    T = 128
    t = 128
    while t <= t_cap:
        if NK_pad % t == 0:
            T = t
        t += 128

    # Batch blocking: amortize per-grid-step overhead when T is small.
    lane_target = min(max_lanes, max(T, 4096))
    bb = 1
    for cand in range(min(B, 16), 0, -1):          # cap unroll at 16
        if B % cand == 0 and cand * T <= lane_target:
            bb = cand
            break
    return bb, T, NK_pad


# ---------------------------------------------------------------------------
# Pass 1: bn0 statistics.  h = W0 @ y is formed on the MXU per batch row and
# only per-channel sum / sum-of-squares are accumulated into a resident
# per-batch-block (Co, 1) output.
# ---------------------------------------------------------------------------
def _bn0_stats_kernel(y_ref, w0_ref, sum_ref, sumsq_ref, *, bb):
    @pl.when(pl.program_id(1) == 0)
    def _():
        sum_ref[...] = jnp.zeros_like(sum_ref)
        sumsq_ref[...] = jnp.zeros_like(sumsq_ref)

    w0 = w0_ref[...]
    s = jnp.zeros(sum_ref.shape, jnp.float32)
    ss = jnp.zeros(sumsq_ref.shape, jnp.float32)
    for bi in range(bb):
        h = jnp.dot(w0, y_ref[bi], preferred_element_type=jnp.float32)  # (Co, T)
        s = s + jnp.sum(h, axis=-1, keepdims=True)
        ss = ss + jnp.sum(h * h, axis=-1, keepdims=True)
    sum_ref[...] += s
    sumsq_ref[...] += ss


# ---------------------------------------------------------------------------
# Pass 2: fused main pipeline (pre-bn1 output, bf16) + bn1 statistics (f32).
# bn0 is applied as a pre-folded per-channel scale/shift computed in the
# wrapper.
# ---------------------------------------------------------------------------
def _adaptive_main_kernel(y_ref, x_ref, w0_ref, w1_ref, sc0_ref, sh0_ref,
                          out_ref, sum1_ref, sumsq1_ref, *, bb, in_ch):
    @pl.when(pl.program_id(1) == 0)
    def _():
        sum1_ref[...] = jnp.zeros_like(sum1_ref)
        sumsq1_ref[...] = jnp.zeros_like(sumsq1_ref)

    co = out_ref.shape[1]
    w0 = w0_ref[...]
    w1 = w1_ref[...]
    sc0 = sc0_ref[...]          # (Co, 1)
    sh0 = sh0_ref[...]          # (Co, 1)

    s1 = jnp.zeros(sum1_ref.shape, jnp.float32)
    ss1 = jnp.zeros(sumsq1_ref.shape, jnp.float32)
    for bi in range(bb):
        # conv0 (1x1) + fused bn0 + leaky_relu
        h = jnp.dot(w0, y_ref[bi], preferred_element_type=jnp.float32)   # (Co, T)
        a = _lrelu(h * sc0 + sh0)
        # conv1 (1x1); weight rows pre-ordered ci-major (row = ci*Co + co).
        wbig = jnp.dot(w1, a, preferred_element_type=jnp.float32)        # (Ci*Co, T)
        # Adaptive per-point contraction over ci: contiguous sublane slices
        # of wbig times broadcast rows of x (loaded once).
        xv = x_ref[bi]                                                    # (Ci, T)
        out = wbig[0:co, :] * xv[0:1, :]
        for ci in range(1, in_ch):
            out = out + wbig[ci * co:(ci + 1) * co, :] * xv[ci:ci + 1, :]
        # Stats on the exact f32 value; HBM round trip in bf16.
        out_ref[bi] = out.astype(out_ref.dtype)
        s1 = s1 + jnp.sum(out, axis=-1, keepdims=True)
        ss1 = ss1 + jnp.sum(out * out, axis=-1, keepdims=True)
    sum1_ref[...] += s1
    sumsq1_ref[...] += ss1


# ---------------------------------------------------------------------------
# Pass 3: fused bn1 scale/shift + leaky_relu (elementwise, fully parallel).
# ---------------------------------------------------------------------------
def _bn1_apply_kernel(o_ref, sc1_ref, sh1_ref, out_ref):
    v = o_ref[...].astype(jnp.float32)
    out_ref[...] = _lrelu(v * sc1_ref[...] + sh1_ref[...])


def adaptive_conv(x, y, params):
    """x: (B, Ci, N, K), y: (B, Cf, N, K) -> (B, Co, N, K)  (NCHW, like PyTorch)."""
    B, Ci, N, K = x.shape
    Cf = y.shape[1]
    w0 = params["w0"].astype(jnp.float32)      # (Co, Cf)      conv0.weight squeezed
    w1 = params["w1"].astype(jnp.float32)      # (Co*Ci, Co)   conv1.weight squeezed
    Co = w0.shape[0]
    NK = N * K
    M = B * NK
    inv_m = 1.0 / M                            # true element count (padding is zero)

    vmem_limit = _vmem_limit_bytes()
    bb, T, NK_pad = _choose_tiling(B, NK, Ci, Cf, Co, vmem_limit)
    nb = B // bb
    Mp = B * NK_pad

    # Native NCHW kept; only the trailing spatial dims are merged.  Zero-pad
    # the point axis to a multiple of the lane tile if needed (zero padding
    # contributes zero to all accumulated statistics).
    x3 = x.reshape(B, Ci, NK).astype(jnp.float32)
    y3 = y.reshape(B, Cf, NK).astype(jnp.float32)
    if NK_pad != NK:
        pad = NK_pad - NK
        x3 = jnp.pad(x3, ((0, 0), (0, 0), (0, pad)))
        y3 = jnp.pad(y3, ((0, 0), (0, 0), (0, pad)))

    # Reorder conv1 rows co-major -> ci-major so the kernel uses contiguous
    # sublane slices (tiny weight tensor, done once).
    w1p = w1.reshape(Co, Ci, Co).transpose(1, 0, 2).reshape(Ci * Co, Co)

    g0 = params["g0"].reshape(Co, 1).astype(jnp.float32)
    b0 = params["b0"].reshape(Co, 1).astype(jnp.float32)
    g1 = params["g1"].reshape(Co, 1).astype(jnp.float32)
    b1 = params["b1"].reshape(Co, 1).astype(jnp.float32)

    grid = (nb, NK_pad // T)

    def tile_spec(ch):
        return pl.BlockSpec((bb, ch, T), lambda b, j: (b, 0, j))

    def const_spec(shape):
        nd = len(shape)
        return pl.BlockSpec(shape, lambda b, j: (0,) * nd)

    y_spec = tile_spec(Cf)
    x_spec = tile_spec(Ci)
    o_spec = tile_spec(Co)
    # Per-batch-block stat partials: resident only across the point axis, so
    # the batch axis can be "parallel" (megacore on v7x).
    stat_spec = pl.BlockSpec((None, Co, 1), lambda b, j: (b, 0, 0))

    # ----------------------- pass 1: bn0 statistics -----------------------
    sum0_p, sumsq0_p = pl.pallas_call(
        functools.partial(_bn0_stats_kernel, bb=bb),
        out_shape=(jax.ShapeDtypeStruct((nb, Co, 1), jnp.float32),
                   jax.ShapeDtypeStruct((nb, Co, 1), jnp.float32)),
        grid=grid,
        in_specs=[y_spec, const_spec((Co, Cf))],
        out_specs=(stat_spec, stat_spec),
        compiler_params=pltpu.CompilerParams(
            dimension_semantics=("parallel", "arbitrary"),
            vmem_limit_bytes=vmem_limit),
        cost_estimate=pl.CostEstimate(
            flops=2 * Mp * Cf * Co + 3 * Mp * Co,
            transcendentals=0,
            bytes_accessed=4 * (Mp * Cf + Co * Cf + 2 * nb * Co)),
    )(y3, w0)

    # bn0 fold (tiny (Co,1) math) hoisted out of the kernel.
    sum0 = jnp.sum(sum0_p, axis=0)
    sumsq0 = jnp.sum(sumsq0_p, axis=0)
    mean0 = sum0 * inv_m
    var0 = sumsq0 * inv_m - mean0 * mean0
    scale0 = g0 * jax.lax.rsqrt(var0 + EPS)
    shift0 = b0 - mean0 * scale0

    # ------------- pass 2: fused main pipeline + bn1 statistics ------------
    out_pre, sum1_p, sumsq1_p = pl.pallas_call(
        functools.partial(_adaptive_main_kernel, bb=bb, in_ch=Ci),
        out_shape=(jax.ShapeDtypeStruct((B, Co, NK_pad), jnp.bfloat16),
                   jax.ShapeDtypeStruct((nb, Co, 1), jnp.float32),
                   jax.ShapeDtypeStruct((nb, Co, 1), jnp.float32)),
        grid=grid,
        in_specs=[y_spec, x_spec, const_spec((Co, Cf)), const_spec((Ci * Co, Co)),
                  const_spec((Co, 1)), const_spec((Co, 1))],
        out_specs=(o_spec, stat_spec, stat_spec),
        compiler_params=pltpu.CompilerParams(
            dimension_semantics=("parallel", "arbitrary"),
            vmem_limit_bytes=vmem_limit),
        cost_estimate=pl.CostEstimate(
            flops=Mp * (2 * Cf * Co + 2 * Co * Ci * Co + 2 * Ci * Co + 8 * Co),
            transcendentals=0,
            bytes_accessed=4 * Mp * (Cf + Ci) + 2 * Mp * Co
                           + 4 * (Co * Cf + Ci * Co * Co + 2 * Co + 4 * nb * Co)),
    )(y3, x3, w0, w1p, scale0, shift0)

    # bn1 fold hoisted out of the kernel.
    sum1 = jnp.sum(sum1_p, axis=0)
    sumsq1 = jnp.sum(sumsq1_p, axis=0)
    mean1 = sum1 * inv_m
    var1 = sumsq1 * inv_m - mean1 * mean1
    scale1 = g1 * jax.lax.rsqrt(var1 + EPS)
    shift1 = b1 - mean1 * scale1

    # ----------------- pass 3: bn1 apply + leaky_relu ----------------------
    out = pl.pallas_call(
        _bn1_apply_kernel,
        out_shape=jax.ShapeDtypeStruct((B, Co, NK_pad), jnp.float32),
        grid=grid,
        in_specs=[o_spec, const_spec((Co, 1)), const_spec((Co, 1))],
        out_specs=o_spec,
        compiler_params=pltpu.CompilerParams(
            dimension_semantics=("parallel", "parallel"),     # megacore on v7x
            vmem_limit_bytes=vmem_limit),
        cost_estimate=pl.CostEstimate(
            flops=4 * Mp * Co,
            transcendentals=0,
            bytes_accessed=2 * Mp * Co + 4 * Mp * Co),
    )(out_pre, scale1, shift1)

    if NK_pad != NK:
        out = out[:, :, :NK]
    return out.reshape(B, Co, N, K)


def adaptive_conv_reference(x, y, params):
    """Pure-JAX reference mirroring the PyTorch forward (training-mode BN)."""
    B, Ci, N, K = x.shape
    w0, w1 = params["w0"], params["w1"]
    Co = w0.shape[0]

    def bn(v, g, b):  # v: (B, C, N, K), stats over (B, N, K), biased variance
        mean = jnp.mean(v, axis=(0, 2, 3), keepdims=True)
        var = jnp.mean((v - mean) ** 2, axis=(0, 2, 3), keepdims=True)
        return (v - mean) * jax.lax.rsqrt(var + EPS) * g.reshape(1, -1, 1, 1) \
               + b.reshape(1, -1, 1, 1)

    def lrelu(v):
        return jnp.where(v >= 0, v, NEG_SLOPE * v)

    y0 = jnp.einsum('of,bfnk->bonk', w0, y)
    y0 = lrelu(bn(y0, params["g0"], params["b0"]))
    y1 = jnp.einsum('po,bonk->bpnk', w1, y0)                   # p = Co*Ci
    y1 = jnp.transpose(y1, (0, 2, 3, 1)).reshape(B, N, K, Co, Ci)
    xp = jnp.transpose(x, (0, 2, 3, 1))[..., None]              # (B,N,K,Ci,1)
    out = jnp.squeeze(jnp.matmul(y1, xp), -1)                   # (B,N,K,Co)
    out = jnp.transpose(out, (0, 3, 1, 2))
    return lrelu(bn(out, params["g1"], params["b1"]))


if __name__ == "__main__":
    # small shapes consistent with the module's forward
    B, in_channels, num_points, k = 2, 4, 16, 8
    feat_channels, out_channels = 32, 16

    key = jax.random.PRNGKey(0)
    k1, k2, k3, k4, k5, k6, k7, k8 = jax.random.split(key, 8)

    params = {
        # conv0.weight: (out, feat, 1, 1) -> (out, feat)
        "w0": jax.random.normal(k1, (out_channels, feat_channels), jnp.float32)
              * (1.0 / np.sqrt(feat_channels)),
        # conv1.weight: (out*in, out, 1, 1) -> (out*in, out)
        "w1": jax.random.normal(k2, (out_channels * in_channels, out_channels), jnp.float32)
              * (1.0 / np.sqrt(out_channels)),
        "g0": 0.5 + jax.random.uniform(k3, (out_channels,), jnp.float32),
        "b0": 0.1 * jax.random.normal(k4, (out_channels,), jnp.float32),
        "g1": 0.5 + jax.random.uniform(k5, (out_channels,), jnp.float32),
        "b1": 0.1 * jax.random.normal(k6, (out_channels,), jnp.float32),
    }

    x = jax.random.normal(k7, (B, in_channels, num_points, k), jnp.float32)
    y = jax.random.normal(k8, (B, feat_channels, num_points, k), jnp.float32)

    fn = jax.jit(adaptive_conv)
    out = jax.block_until_ready(fn(x, y, params))
    ref = jax.block_until_ready(adaptive_conv_reference(x, y, params))

    assert out.shape == (B, out_channels, num_points, k), out.shape
    # atol loosened slightly (2e-2) for the bf16 pre-bn1 intermediate.
    np.testing.assert_allclose(np.asarray(out), np.asarray(ref), rtol=1e-2, atol=2e-2)
    print("KERNEL_OK")
</pallas_src>

<mosaic_0001>
module attributes {stable_mosaic.version = 11 : i64} {
  func.func @_bn0_stats_kernel(%arg0: i32, %arg1: i32, %arg2: memref<2x32x128xf32, #tpu.memory_space<vmem>>, %arg3: memref<16x32xf32, #tpu.memory_space<vmem>>, %arg4: memref<1x16x1xf32, #tpu.memory_space<vmem>>, %arg5: memref<1x16x1xf32, #tpu.memory_space<vmem>>) attributes {dimension_semantics = [#tpu.dimension_semantics<parallel>, #tpu.dimension_semantics<arbitrary>], iteration_bounds = array<i64: 1, 1>, scalar_prefetch = 0 : i64, scratch_operands = 0 : i64, tpu.core_type = #tpu.core_type<tc>, window_params = [{transform_indices = @transform_0, window_bounds = array<i64: 2, 32, 128>}, {pipeline_mode = #tpu.pipeline_mode<synchronous>, transform_indices = @transform_1, window_bounds = array<i64: 16, 32>}, {transform_indices = @transform_2, window_bounds = array<i64: 1, 16, 1>}, {transform_indices = @transform_3, window_bounds = array<i64: 1, 16, 1>}]} {
    %c0_i32 = arith.constant 0 : i32
    %0 = arith.cmpi eq, %arg1, %c0_i32 : i32
    %1 = arith.extui %0 : i1 to i32
    %c0_i32_0 = arith.constant 0 : i32
    %2 = arith.cmpi ne, %1, %c0_i32_0 : i32
    scf.if %2 {
      %cst_26 = arith.constant 0.000000e+00 : f32
      %38 = vector.broadcast %cst_26 : f32 to vector<16x1xf32>
      %c0_27 = arith.constant 0 : index
      %c0_28 = arith.constant 0 : index
      %c0_29 = arith.constant 0 : index
      %39 = vector.load %arg4[%c0_27, %c0_28, %c0_29] : memref<1x16x1xf32, #tpu.memory_space<vmem>>, vector<1x16x1xf32>
      %40 = vector.shape_cast %39 : vector<1x16x1xf32> to vector<16x1xf32>
      %41 = vector.shape_cast %38 : vector<16x1xf32> to vector<1x16x1xf32>
      tpu.vector_store %arg4[%c0_27, %c0_28, %c0_29], %41 {strides = array<i32>} : memref<1x16x1xf32, #tpu.memory_space<vmem>>, vector<1x16x1xf32>,
      %cst_30 = arith.constant 0.000000e+00 : f32
      %42 = vector.broadcast %cst_30 : f32 to vector<16x1xf32>
      %c0_31 = arith.constant 0 : index
      %c0_32 = arith.constant 0 : index
      %c0_33 = arith.constant 0 : index
      %43 = vector.load %arg5[%c0_31, %c0_32, %c0_33] : memref<1x16x1xf32, #tpu.memory_space<vmem>>, vector<1x16x1xf32>
      %44 = vector.shape_cast %43 : vector<1x16x1xf32> to vector<16x1xf32>
      %45 = vector.shape_cast %42 : vector<16x1xf32> to vector<1x16x1xf32>
      tpu.vector_store %arg5[%c0_31, %c0_32, %c0_33], %45 {strides = array<i32>} : memref<1x16x1xf32, #tpu.memory_space<vmem>>, vector<1x16x1xf32>,
    } else {
    }
    %c0 = arith.constant 0 : index
    %c0_1 = arith.constant 0 : index
    %3 = vector.load %arg3[%c0, %c0_1] : memref<16x32xf32, #tpu.memory_space<vmem>>, vector<16x32xf32>
    %cst = arith.constant 0.000000e+00 : f32
    %4 = vector.broadcast %cst : f32 to vector<16x1xf32>
    %cst_2 = arith.constant 0.000000e+00 : f32
    %5 = vector.broadcast %cst_2 : f32 to vector<16x1xf32>
    %c0_3 = arith.constant 0 : index
    %c0_4 = arith.constant 0 : index
    %c0_5 = arith.constant 0 : index
    %6 = vector.load %arg2[%c0_3, %c0_4, %c0_5] : memref<2x32x128xf32, #tpu.memory_space<vmem>>, vector<1x32x128xf32>
    %7 = vector.shape_cast %6 : vector<1x32x128xf32> to vector<32x128xf32>
    %cst_6 = arith.constant dense<0.000000e+00> : vector<16x128xf32>
    %8 = tpu.matmul %3, %7, %cst_6 {dimension_numbers = #tpu.dot_dimension_numbers<[1], [0], [0], [1], [0, 0, 1, 1], [], []>} : vector<16x32xf32>, vector<32x128xf32>, vector<16x128xf32> -> vector<16x128xf32>
    %cst_7 = arith.constant dense<0.000000e+00> : vector<16xf32>
    %9 = vector.multi_reduction <add>, %8, %cst_7 [1] : vector<16x128xf32> to vector<16xf32>
    %10 = vector.shape_cast %9 : vector<16xf32> to vector<16x1xf32>
    %11 = arith.addf %4, %10 : vector<16x1xf32>
    %12 = arith.mulf %8, %8 : vector<16x128xf32>
    %cst_8 = arith.constant dense<0.000000e+00> : vector<16xf32>
    %13 = vector.multi_reduction <add>, %12, %cst_8 [1] : vector<16x128xf32> to vector<16xf32>
    %14 = vector.shape_cast %13 : vector<16xf32> to vector<16x1xf32>
    %15 = arith.addf %5, %14 : vector<16x1xf32>
    %c1 = arith.constant 1 : index
    %c0_9 = arith.constant 0 : index
    %c0_10 = arith.constant 0 : index
    %16 = vector.load %arg2[%c1, %c0_9, %c0_10] : memref<2x32x128xf32, #tpu.memory_space<vmem>>, vector<1x32x128xf32>
    %17 = vector.shape_cast %16 : vector<1x32x128xf32> to vector<32x128xf32>
    %cst_11 = arith.constant dense<0.000000e+00> : vector<16x128xf32>
    %18 = tpu.matmul %3, %17, %cst_11 {dimension_numbers = #tpu.dot_dimension_numbers<[1], [0], [0], [1], [0, 0, 1, 1], [], []>} : vector<16x32xf32>, vector<32x128xf32>, vector<16x128xf32> -> vector<16x128xf32>
    %cst_12 = arith.constant dense<0.000000e+00> : vector<16xf32>
    %19 = vector.multi_reduction <add>, %18, %cst_12 [1] : vector<16x128xf32> to vector<16xf32>
    %20 = vector.shape_cast %19 : vector<16xf32> to vector<16x1xf32>
    %21 = arith.addf %11, %20 : vector<16x1xf32>
    %22 = arith.mulf %18, %18 : vector<16x128xf32>
    %cst_13 = arith.constant dense<0.000000e+00> : vector<16xf32>
    %23 = vector.multi_reduction <add>, %22, %cst_13 [1] : vector<16x128xf32> to vector<16xf32>
    %24 = vector.shape_cast %23 : vector<16xf32> to vector<16x1xf32>
    %25 = arith.addf %15, %24 : vector<16x1xf32>
    %c0_14 = arith.constant 0 : index
    %c0_15 = arith.constant 0 : index
    %c0_16 = arith.constant 0 : index
    %26 = vector.load %arg4[%c0_14, %c0_15, %c0_16] : memref<1x16x1xf32, #tpu.memory_space<vmem>>, vector<1x16x1xf32>
    %27 = vector.shape_cast %26 : vector<1x16x1xf32> to vector<16x1xf32>
    %28 = arith.addf %27, %21 : vector<16x1xf32>
    %c0_17 = arith.constant 0 : index
    %c0_18 = arith.constant 0 : index
    %c0_19 = arith.constant 0 : index
    %29 = vector.load %arg4[%c0_17, %c0_18, %c0_19] : memref<1x16x1xf32, #tpu.memory_space<vmem>>, vector<1x16x1xf32>
    %30 = vector.shape_cast %29 : vector<1x16x1xf32> to vector<16x1xf32>
    %31 = vector.shape_cast %28 : vector<16x1xf32> to vector<1x16x1xf32>
    tpu.vector_store %arg4[%c0_17, %c0_18, %c0_19], %31 {strides = array<i32>} : memref<1x16x1xf32, #tpu.memory_space<vmem>>, vector<1x16x1xf32>,
    %c0_20 = arith.constant 0 : index
    %c0_21 = arith.constant 0 : index
    %c0_22 = arith.constant 0 : index
    %32 = vector.load %arg5[%c0_20, %c0_21, %c0_22] : memref<1x16x1xf32, #tpu.memory_space<vmem>>, vector<1x16x1xf32>
    %33 = vector.shape_cast %32 : vector<1x16x1xf32> to vector<16x1xf32>
    %34 = arith.addf %33, %25 : vector<16x1xf32>
    %c0_23 = arith.constant 0 : index
    %c0_24 = arith.constant 0 : index
    %c0_25 = arith.constant 0 : index
    %35 = vector.load %arg5[%c0_23, %c0_24, %c0_25] : memref<1x16x1xf32, #tpu.memory_space<vmem>>, vector<1x16x1xf32>
    %36 = vector.shape_cast %35 : vector<1x16x1xf32> to vector<16x1xf32>
    %37 = vector.shape_cast %34 : vector<16x1xf32> to vector<1x16x1xf32>
    tpu.vector_store %arg5[%c0_23, %c0_24, %c0_25], %37 {strides = array<i32>} : memref<1x16x1xf32, #tpu.memory_space<vmem>>, vector<1x16x1xf32>,
    return
  }
  func.func @transform_0(%arg0: i32, %arg1: i32) -> (i32, i32, i32) {
    %c0_i32 = arith.constant 0 : i32
    %c0_i32_0 = arith.constant 0 : i32
    return %arg0, %c0_i32, %arg1 : i32, i32, i32
  }
  func.func @transform_1(%arg0: i32, %arg1: i32) -> (i32, i32) {
    %c0_i32 = arith.constant 0 : i32
    %c0_i32_0 = arith.constant 0 : i32
    %c0_i32_1 = arith.constant 0 : i32
    return %c0_i32, %c0_i32_0 : i32, i32
  }
  func.func @transform_2(%arg0: i32, %arg1: i32) -> (i32, i32, i32) {
    %c0_i32 = arith.constant 0 : i32
    %c0_i32_0 = arith.constant 0 : i32
    %c0_i32_1 = arith.constant 0 : i32
    return %arg0, %c0_i32, %c0_i32_0 : i32, i32, i32
  }
  func.func @transform_3(%arg0: i32, %arg1: i32) -> (i32, i32, i32) {
    %c0_i32 = arith.constant 0 : i32
    %c0_i32_0 = arith.constant 0 : i32
    %c0_i32_1 = arith.constant 0 : i32
    return %arg0, %c0_i32, %c0_i32_0 : i32, i32, i32
  }
}

module attributes {stable_mosaic.version = 11 : i64} {
  func.func @_bn1_apply_kernel(%arg0: i32, %arg1: i32, %arg2: memref<2x16x128xbf16, #tpu.memory_space<vmem>>, %arg3: memref<16x1xf32, #tpu.memory_space<vmem>>, %arg4: memref<16x1xf32, #tpu.memory_space<vmem>>, %arg5: memref<2x16x128xf32, #tpu.memory_space<vmem>>) attributes {dimension_semantics = [#tpu.dimension_semantics<parallel>, #tpu.dimension_semantics<parallel>], iteration_bounds = array<i64: 1, 1>, scalar_prefetch = 0 : i64, scratch_operands = 0 : i64, tpu.core_type = #tpu.core_type<tc>, window_params = [{transform_indices = @transform_0, window_bounds = array<i64: 2, 16, 128>}, {pipeline_mode = #tpu.pipeline_mode<synchronous>, transform_indices = @transform_1, window_bounds = array<i64: 16, 1>}, {pipeline_mode = #tpu.pipeline_mode<synchronous>, transform_indices = @transform_2, window_bounds = array<i64: 16, 1>}, {transform_indices = @transform_3, window_bounds = array<i64: 2, 16, 128>}]} {
    %c0 = arith.constant 0 : index
    %c0_0 = arith.constant 0 : index
    %c0_1 = arith.constant 0 : index
    %0 = vector.load %arg2[%c0, %c0_0, %c0_1] : memref<2x16x128xbf16, #tpu.memory_space<vmem>>, vector<2x16x128xbf16>
    %1 = arith.extf %0 : vector<2x16x128xbf16> to vector<2x16x128xf32>
    %c0_2 = arith.constant 0 : index
    %c0_3 = arith.constant 0 : index
    %2 = vector.load %arg3[%c0_2, %c0_3] : memref<16x1xf32, #tpu.memory_space<vmem>>, vector<16x1xf32>
    %3 = vector.shape_cast %2 : vector<16x1xf32> to vector<1x16x1xf32>
    %4 = vector.broadcast %3 : vector<1x16x1xf32> to vector<2x16x128xf32>
    %5 = arith.mulf %1, %4 : vector<2x16x128xf32>
    %c0_4 = arith.constant 0 : index
    %c0_5 = arith.constant 0 : index
    %6 = vector.load %arg4[%c0_4, %c0_5] : memref<16x1xf32, #tpu.memory_space<vmem>>, vector<16x1xf32>
    %7 = vector.shape_cast %6 : vector<16x1xf32> to vector<1x16x1xf32>
    %8 = vector.broadcast %7 : vector<1x16x1xf32> to vector<2x16x128xf32>
    %9 = arith.addf %5, %8 : vector<2x16x128xf32>
    %cst = arith.constant 0.000000e+00 : f32
    %10 = vector.broadcast %cst : f32 to vector<2x16x128xf32>
    %11 = arith.cmpf oge, %9, %10 : vector<2x16x128xf32>
    %cst_6 = arith.constant 2.000000e-01 : f32
    %12 = vector.broadcast %cst_6 : f32 to vector<2x16x128xf32>
    %13 = arith.mulf %12, %9 : vector<2x16x128xf32>
    %14 = arith.select %11, %9, %13 : vector<2x16x128xi1>, vector<2x16x128xf32>
    %c0_7 = arith.constant 0 : index
    %c0_8 = arith.constant 0 : index
    %c0_9 = arith.constant 0 : index
    %15 = vector.load %arg5[%c0_7, %c0_8, %c0_9] : memref<2x16x128xf32, #tpu.memory_space<vmem>>, vector<2x16x128xf32>
    tpu.vector_store %arg5[%c0_7, %c0_8, %c0_9], %14 {strides = array<i32>} : memref<2x16x128xf32, #tpu.memory_space<vmem>>, vector<2x16x128xf32>,
    return
  }
  func.func @transform_0(%arg0: i32, %arg1: i32) -> (i32, i32, i32) {
    %c0_i32 = arith.constant 0 : i32
    %c0_i32_0 = arith.constant 0 : i32
    return %arg0, %c0_i32, %arg1 : i32, i32, i32
  }
  func.func @transform_1(%arg0: i32, %arg1: i32) -> (i32, i32) {
    %c0_i32 = arith.constant 0 : i32
    %c0_i32_0 = arith.constant 0 : i32
    %c0_i32_1 = arith.constant 0 : i32
    return %c0_i32, %c0_i32_0 : i32, i32
  }
  func.func @transform_2(%arg0: i32, %arg1: i32) -> (i32, i32) {
    %c0_i32 = arith.constant 0 : i32
    %c0_i32_0 = arith.constant 0 : i32
    %c0_i32_1 = arith.constant 0 : i32
    return %c0_i32, %c0_i32_0 : i32, i32
  }
  func.func @transform_3(%arg0: i32, %arg1: i32) -> (i32, i32, i32) {
    %c0_i32 = arith.constant 0 : i32
    %c0_i32_0 = arith.constant 0 : i32
    return %arg0, %c0_i32, %arg1 : i32, i32, i32
  }
}

module attributes {stable_mosaic.version = 11 : i64} {
  func.func @_adaptive_main_kernel(%arg0: i32, %arg1: i32, %arg2: memref<2x32x128xf32, #tpu.memory_space<vmem>>, %arg3: memref<2x4x128xf32, #tpu.memory_space<vmem>>, %arg4: memref<16x32xf32, #tpu.memory_space<vmem>>, %arg5: memref<64x16xf32, #tpu.memory_space<vmem>>, %arg6: memref<16x1xf32, #tpu.memory_space<vmem>>, %arg7: memref<16x1xf32, #tpu.memory_space<vmem>>, %arg8: memref<2x16x128xbf16, #tpu.memory_space<vmem>>, %arg9: memref<1x16x1xf32, #tpu.memory_space<vmem>>, %arg10: memref<1x16x1xf32, #tpu.memory_space<vmem>>) attributes {dimension_semantics = [#tpu.dimension_semantics<parallel>, #tpu.dimension_semantics<arbitrary>], iteration_bounds = array<i64: 1, 1>, scalar_prefetch = 0 : i64, scratch_operands = 0 : i64, tpu.core_type = #tpu.core_type<tc>, window_params = [{transform_indices = @transform_0, window_bounds = array<i64: 2, 32, 128>}, {transform_indices = @transform_1, window_bounds = array<i64: 2, 4, 128>}, {pipeline_mode = #tpu.pipeline_mode<synchronous>, transform_indices = @transform_2, window_bounds = array<i64: 16, 32>}, {pipeline_mode = #tpu.pipeline_mode<synchronous>, transform_indices = @transform_3, window_bounds = array<i64: 64, 16>}, {pipeline_mode = #tpu.pipeline_mode<synchronous>, transform_indices = @transform_4, window_bounds = array<i64: 16, 1>}, {pipeline_mode = #tpu.pipeline_mode<synchronous>, transform_indices = @transform_5, window_bounds = array<i64: 16, 1>}, {transform_indices = @transform_6, window_bounds = array<i64: 2, 16, 128>}, {transform_indices = @transform_7, window_bounds = array<i64: 1, 16, 1>}, {transform_indices = @transform_8, window_bounds = array<i64: 1, 16, 1>}]} {
    %c0_i32 = arith.constant 0 : i32
    %0 = arith.cmpi eq, %arg1, %c0_i32 : i32
    %1 = arith.extui %0 : i1 to i32
    %c0_i32_0 = arith.constant 0 : i32
    %2 = arith.cmpi ne, %1, %c0_i32_0 : i32
    scf.if %2 {
      %cst_50 = arith.constant 0.000000e+00 : f32
      %111 = vector.broadcast %cst_50 : f32 to vector<16x1xf32>
      %c0_51 = arith.constant 0 : index
      %c0_52 = arith.constant 0 : index
      %c0_53 = arith.constant 0 : index
      %112 = vector.load %arg9[%c0_51, %c0_52, %c0_53] : memref<1x16x1xf32, #tpu.memory_space<vmem>>, vector<1x16x1xf32>
      %113 = vector.shape_cast %112 : vector<1x16x1xf32> to vector<16x1xf32>
      %114 = vector.shape_cast %111 : vector<16x1xf32> to vector<1x16x1xf32>
      tpu.vector_store %arg9[%c0_51, %c0_52, %c0_53], %114 {strides = array<i32>} : memref<1x16x1xf32, #tpu.memory_space<vmem>>, vector<1x16x1xf32>,
      %cst_54 = arith.constant 0.000000e+00 : f32
      %115 = vector.broadcast %cst_54 : f32 to vector<16x1xf32>
      %c0_55 = arith.constant 0 : index
      %c0_56 = arith.constant 0 : index
      %c0_57 = arith.constant 0 : index
      %116 = vector.load %arg10[%c0_55, %c0_56, %c0_57] : memref<1x16x1xf32, #tpu.memory_space<vmem>>, vector<1x16x1xf32>
      %117 = vector.shape_cast %116 : vector<1x16x1xf32> to vector<16x1xf32>
      %118 = vector.shape_cast %115 : vector<16x1xf32> to vector<1x16x1xf32>
      tpu.vector_store %arg10[%c0_55, %c0_56, %c0_57], %118 {strides = array<i32>} : memref<1x16x1xf32, #tpu.memory_space<vmem>>, vector<1x16x1xf32>,
    } else {
    }
    %c0 = arith.constant 0 : index
    %c0_1 = arith.constant 0 : index
    %3 = vector.load %arg4[%c0, %c0_1] : memref<16x32xf32, #tpu.memory_space<vmem>>, vector<16x32xf32>
    %c0_2 = arith.constant 0 : index
    %c0_3 = arith.constant 0 : index
    %4 = vector.load %arg5[%c0_2, %c0_3] : memref<64x16xf32, #tpu.memory_space<vmem>>, vector<64x16xf32>
    %c0_4 = arith.constant 0 : index
    %c0_5 = arith.constant 0 : index
    %5 = vector.load %arg6[%c0_4, %c0_5] : memref<16x1xf32, #tpu.memory_space<vmem>>, vector<16x1xf32>
    %c0_6 = arith.constant 0 : index
    %c0_7 = arith.constant 0 : index
    %6 = vector.load %arg7[%c0_6, %c0_7] : memref<16x1xf32, #tpu.memory_space<vmem>>, vector<16x1xf32>
    %cst = arith.constant 0.000000e+00 : f32
    %7 = vector.broadcast %cst : f32 to vector<16x1xf32>
    %cst_8 = arith.constant 0.000000e+00 : f32
    %8 = vector.broadcast %cst_8 : f32 to vector<16x1xf32>
    %c0_9 = arith.constant 0 : index
    %c0_10 = arith.constant 0 : index
    %c0_11 = arith.constant 0 : index
    %9 = vector.load %arg2[%c0_9, %c0_10, %c0_11] : memref<2x32x128xf32, #tpu.memory_space<vmem>>, vector<1x32x128xf32>
    %10 = vector.shape_cast %9 : vector<1x32x128xf32> to vector<32x128xf32>
    %cst_12 = arith.constant dense<0.000000e+00> : vector<16x128xf32>
    %11 = tpu.matmul %3, %10, %cst_12 {dimension_numbers = #tpu.dot_dimension_numbers<[1], [0], [0], [1], [0, 0, 1, 1], [], []>} : vector<16x32xf32>, vector<32x128xf32>, vector<16x128xf32> -> vector<16x128xf32>
    %12 = vector.broadcast %5 : vector<16x1xf32> to vector<16x128xf32>
    %13 = arith.mulf %11, %12 : vector<16x128xf32>
    %14 = vector.broadcast %6 : vector<16x1xf32> to vector<16x128xf32>
    %15 = arith.addf %13, %14 : vector<16x128xf32>
    %cst_13 = arith.constant 0.000000e+00 : f32
    %16 = vector.broadcast %cst_13 : f32 to vector<16x128xf32>
    %17 = arith.cmpf oge, %15, %16 : vector<16x128xf32>
    %cst_14 = arith.constant 2.000000e-01 : f32
    %18 = vector.broadcast %cst_14 : f32 to vector<16x128xf32>
    %19 = arith.mulf %18, %15 : vector<16x128xf32>
    %20 = arith.select %17, %15, %19 : vector<16x128xi1>, vector<16x128xf32>
    %cst_15 = arith.constant dense<0.000000e+00> : vector<64x128xf32>
    %21 = tpu.matmul %4, %20, %cst_15 {dimension_numbers = #tpu.dot_dimension_numbers<[1], [0], [0], [1], [0, 0, 1, 1], [], []>} : vector<64x16xf32>, vector<16x128xf32>, vector<64x128xf32> -> vector<64x128xf32>
    %c0_16 = arith.constant 0 : index
    %c0_17 = arith.constant 0 : index
    %c0_18 = arith.constant 0 : index
    %22 = vector.load %arg3[%c0_16, %c0_17, %c0_18] : memref<2x4x128xf32, #tpu.memory_space<vmem>>, vector<1x4x128xf32>
    %23 = vector.shape_cast %22 : vector<1x4x128xf32> to vector<4x128xf32>
    %24 = vector.extract_strided_slice %21 {offsets = [0, 0], sizes = [16, 128], strides = [1, 1]} : vector<64x128xf32> to vector<16x128xf32>
    %25 = vector.extract_strided_slice %23 {offsets = [0, 0], sizes = [1, 128], strides = [1, 1]} : vector<4x128xf32> to vector<1x128xf32>
    %26 = vector.broadcast %25 : vector<1x128xf32> to vector<16x128xf32>
    %27 = arith.mulf %24, %26 : vector<16x128xf32>
    %28 = vector.extract_strided_slice %21 {offsets = [16, 0], sizes = [16, 128], strides = [1, 1]} : vector<64x128xf32> to vector<16x128xf32>
    %29 = vector.extract_strided_slice %23 {offsets = [1, 0], sizes = [1, 128], strides = [1, 1]} : vector<4x128xf32> to vector<1x128xf32>
    %30 = vector.broadcast %29 : vector<1x128xf32> to vector<16x128xf32>
    %31 = arith.mulf %28, %30 : vector<16x128xf32>
    %32 = arith.addf %27, %31 : vector<16x128xf32>
    %33 = vector.extract_strided_slice %21 {offsets = [32, 0], sizes = [16, 128], strides = [1, 1]} : vector<64x128xf32> to vector<16x128xf32>
    %34 = vector.extract_strided_slice %23 {offsets = [2, 0], sizes = [1, 128], strides = [1, 1]} : vector<4x128xf32> to vector<1x128xf32>
    %35 = vector.broadcast %34 : vector<1x128xf32> to vector<16x128xf32>
    %36 = arith.mulf %33, %35 : vector<16x128xf32>
    %37 = arith.addf %32, %36 : vector<16x128xf32>
    %38 = vector.extract_strided_slice %21 {offsets = [48, 0], sizes = [16, 128], strides = [1, 1]} : vector<64x128xf32> to vector<16x128xf32>
    %39 = vector.extract_strided_slice %23 {offsets = [3, 0], sizes = [1, 128], strides = [1, 1]} : vector<4x128xf32> to vector<1x128xf32>
    %40 = vector.broadcast %39 : vector<1x128xf32> to vector<16x128xf32>
    %41 = arith.mulf %38, %40 : vector<16x128xf32>
    %42 = arith.addf %37, %41 : vector<16x128xf32>
    %43 = arith.truncf %42 : vector<16x128xf32> to vector<16x128xbf16>
    %c0_19 = arith.constant 0 : index
    %c0_20 = arith.constant 0 : index
    %c0_21 = arith.constant 0 : index
    %44 = vector.load %arg8[%c0_19, %c0_20, %c0_21] : memref<2x16x128xbf16, #tpu.memory_space<vmem>>, vector<1x16x128xbf16>
    %45 = vector.shape_cast %44 : vector<1x16x128xbf16> to vector<16x128xbf16>
    %46 = vector.shape_cast %43 : vector<16x128xbf16> to vector<1x16x128xbf16>
    tpu.vector_store %arg8[%c0_19, %c0_20, %c0_21], %46 {strides = array<i32>} : memref<2x16x128xbf16, #tpu.memory_space<vmem>>, vector<1x16x128xbf16>,
    %cst_22 = arith.constant dense<0.000000e+00> : vector<16xf32>
    %47 = vector.multi_reduction <add>, %42, %cst_22 [1] : vector<16x128xf32> to vector<16xf32>
    %48 = vector.shape_cast %47 : vector<16xf32> to vector<16x1xf32>
    %49 = arith.addf %7, %48 : vector<16x1xf32>
    %50 = arith.mulf %42, %42 : vector<16x128xf32>
    %cst_23 = arith.constant dense<0.000000e+00> : vector<16xf32>
    %51 = vector.multi_reduction <add>, %50, %cst_23 [1] : vector<16x128xf32> to vector<16xf32>
    %52 = vector.shape_cast %51 : vector<16xf32> to vector<16x1xf32>
    %53 = arith.addf %8, %52 : vector<16x1xf32>
    %c1 = arith.constant 1 : index
    %c0_24 = arith.constant 0 : index
    %c0_25 = arith.constant 0 : index
    %54 = vector.load %arg2[%c1, %c0_24, %c0_25] : memref<2x32x128xf32, #tpu.memory_space<vmem>>, vector<1x32x128xf32>
    %55 = vector.shape_cast %54 : vector<1x32x128xf32> to vector<32x128xf32>
    %cst_26 = arith.constant dense<0.000000e+00> : vector<16x128xf32>
    %56 = tpu.matmul %3, %55, %cst_26 {dimension_numbers = #tpu.dot_dimension_numbers<[1], [0], [0], [1], [0, 0, 1, 1], [], []>} : vector<16x32xf32>, vector<32x128xf32>, vector<16x128xf32> -> vector<16x128xf32>
    %57 = vector.broadcast %5 : vector<16x1xf32> to vector<16x128xf32>
    %58 = arith.mulf %56, %57 : vector<16x128xf32>
    %59 = vector.broadcast %6 : vector<16x1xf32> to vector<16x128xf32>
    %60 = arith.addf %58, %59 : vector<16x128xf32>
    %cst_27 = arith.constant 0.000000e+00 : f32
    %61 = vector.broadcast %cst_27 : f32 to vector<16x128xf32>
    %62 = arith.cmpf oge, %60, %61 : vector<16x128xf32>
    %cst_28 = arith.constant 2.000000e-01 : f32
    %63 = vector.broadcast %cst_28 : f32 to vector<16x128xf32>
    %64 = arith.mulf %63, %60 : vector<16x128xf32>
    %65 = arith.select %62, %60, %64 : vector<16x128xi1>, vector<16x128xf32>
    %cst_29 = arith.constant dense<0.000000e+00> : vector<64x128xf32>
    %66 = tpu.matmul %4, %65, %cst_29 {dimension_numbers = #tpu.dot_dimension_numbers<[1], [0], [0], [1], [0, 0, 1, 1], [], []>} : vector<64x16xf32>, vector<16x128xf32>, vector<64x128xf32> -> vector<64x128xf32>
    %c1_30 = arith.constant 1 : index
    %c0_31 = arith.constant 0 : index
    %c0_32 = arith.constant 0 : index
    %67 = vector.load %arg3[%c1_30, %c0_31, %c0_32] : memref<2x4x128xf32, #tpu.memory_space<vmem>>, vector<1x4x128xf32>
    %68 = vector.shape_cast %67 : vector<1x4x128xf32> to vector<4x128xf32>
    %69 = vector.extract_strided_slice %66 {offsets = [0, 0], sizes = [16, 128], strides = [1, 1]} : vector<64x128xf32> to vector<16x128xf32>
    %70 = vector.extract_strided_slice %68 {offsets = [0, 0], sizes = [1, 128], strides = [1, 1]} : vector<4x128xf32> to vector<1x128xf32>
    %71 = vector.broadcast %70 : vector<1x128xf32> to vector<16x128xf32>
    %72 = arith.mulf %69, %71 : vector<16x128xf32>
    %73 = vector.extract_strided_slice %66 {offsets = [16, 0], sizes = [16, 128], strides = [1, 1]} : vector<64x128xf32> to vector<16x128xf32>
    %74 = vector.extract_strided_slice %68 {offsets = [1, 0], sizes = [1, 128], strides = [1, 1]} : vector<4x128xf32> to vector<1x128xf32>
    %75 = vector.broadcast %74 : vector<1x128xf32> to vector<16x128xf32>
    %76 = arith.mulf %73, %75 : vector<16x128xf32>
    %77 = arith.addf %72, %76 : vector<16x128xf32>
    %78 = vector.extract_strided_slice %66 {offsets = [32, 0], sizes = [16, 128], strides = [1, 1]} : vector<64x128xf32> to vector<16x128xf32>
    %79 = vector.extract_strided_slice %68 {offsets = [2, 0], sizes = [1, 128], strides = [1, 1]} : vector<4x128xf32> to vector<1x128xf32>
    %80 = vector.broadcast %79 : vector<1x128xf32> to vector<16x128xf32>
    %81 = arith.mulf %78, %80 : vector<16x128xf32>
    %82 = arith.addf %77, %81 : vector<16x128xf32>
    %83 = vector.extract_strided_slice %66 {offsets = [48, 0], sizes = [16, 128], strides = [1, 1]} : vector<64x128xf32> to vector<16x128xf32>
    %84 = vector.extract_strided_slice %68 {offsets = [3, 0], sizes = [1, 128], strides = [1, 1]} : vector<4x128xf32> to vector<1x128xf32>
    %85 = vector.broadcast %84 : vector<1x128xf32> to vector<16x128xf32>
    %86 = arith.mulf %83, %85 : vector<16x128xf32>
    %87 = arith.addf %82, %86 : vector<16x128xf32>
    %88 = arith.truncf %87 : vector<16x128xf32> to vector<16x128xbf16>
    %c1_33 = arith.constant 1 : index
    %c0_34 = arith.constant 0 : index
    %c0_35 = arith.constant 0 : index
    %89 = vector.load %arg8[%c1_33, %c0_34, %c0_35] : memref<2x16x128xbf16, #tpu.memory_space<vmem>>, vector<1x16x128xbf16>
    %90 = vector.shape_cast %89 : vector<1x16x128xbf16> to vector<16x128xbf16>
    %91 = vector.shape_cast %88 : vector<16x128xbf16> to vector<1x16x128xbf16>
    tpu.vector_store %arg8[%c1_33, %c0_34, %c0_35], %91 {strides = array<i32>} : memref<2x16x128xbf16, #tpu.memory_space<vmem>>, vector<1x16x128xbf16>,
    %cst_36 = arith.constant dense<0.000000e+00> : vector<16xf32>
    %92 = vector.multi_reduction <add>, %87, %cst_36 [1] : vector<16x128xf32> to vector<16xf32>
    %93 = vector.shape_cast %92 : vector<16xf32> to vector<16x1xf32>
    %94 = arith.addf %49, %93 : vector<16x1xf32>
    %95 = arith.mulf %87, %87 : vector<16x128xf32>
    %cst_37 = arith.constant dense<0.000000e+00> : vector<16xf32>
    %96 = vector.multi_reduction <add>, %95, %cst_37 [1] : vector<16x128xf32> to vector<16xf32>
    %97 = vector.shape_cast %96 : vector<16xf32> to vector<16x1xf32>
    %98 = arith.addf %53, %97 : vector<16x1xf32>
    %c0_38 = arith.constant 0 : index
    %c0_39 = arith.constant 0 : index
    %c0_40 = arith.constant 0 : index
    %99 = vector.load %arg9[%c0_38, %c0_39, %c0_40] : memref<1x16x1xf32, #tpu.memory_space<vmem>>, vector<1x16x1xf32>
    %100 = vector.shape_cast %99 : vector<1x16x1xf32> to vector<16x1xf32>
    %101 = arith.addf %100, %94 : vector<16x1xf32>
    %c0_41 = arith.constant 0 : index
    %c0_42 = arith.constant 0 : index
    %c0_43 = arith.constant 0 : index
    %102 = vector.load %arg9[%c0_41, %c0_42, %c0_43] : memref<1x16x1xf32, #tpu.memory_space<vmem>>, vector<1x16x1xf32>
    %103 = vector.shape_cast %102 : vector<1x16x1xf32> to vector<16x1xf32>
    %104 = vector.shape_cast %101 : vector<16x1xf32> to vector<1x16x1xf32>
    tpu.vector_store %arg9[%c0_41, %c0_42, %c0_43], %104 {strides = array<i32>} : memref<1x16x1xf32, #tpu.memory_space<vmem>>, vector<1x16x1xf32>,
    %c0_44 = arith.constant 0 : index
    %c0_45 = arith.constant 0 : index
    %c0_46 = arith.constant 0 : index
    %105 = vector.load %arg10[%c0_44, %c0_45, %c0_46] : memref<1x16x1xf32, #tpu.memory_space<vmem>>, vector<1x16x1xf32>
    %106 = vector.shape_cast %105 : vector<1x16x1xf32> to vector<16x1xf32>
    %107 = arith.addf %106, %98 : vector<16x1xf32>
    %c0_47 = arith.constant 0 : index
    %c0_48 = arith.constant 0 : index
    %c0_49 = arith.constant 0 : index
    %108 = vector.load %arg10[%c0_47, %c0_48, %c0_49] : memref<1x16x1xf32, #tpu.memory_space<vmem>>, vector<1x16x1xf32>
    %109 = vector.shape_cast %108 : vector<1x16x1xf32> to vector<16x1xf32>
    %110 = vector.shape_cast %107 : vector<16x1xf32> to vector<1x16x1xf32>
    tpu.vector_store %arg10[%c0_47, %c0_48, %c0_49], %110 {strides = array<i32>} : memref<1x16x1xf32, #tpu.memory_space<vmem>>, vector<1x16x1xf32>,
    return
  }
  func.func @transform_0(%arg0: i32, %arg1: i32) -> (i32, i32, i32) {
    %c0_i32 = arith.constant 0 : i32
    %c0_i32_0 = arith.constant 0 : i32
    return %arg0, %c0_i32, %arg1 : i32, i32, i32
  }
  func.func @transform_1(%arg0: i32, %arg1: i32) -> (i32, i32, i32) {
    %c0_i32 = arith.constant 0 : i32
    %c0_i32_0 = arith.constant 0 : i32
    return %arg0, %c0_i32, %arg1 : i32, i32, i32
  }
  func.func @transform_2(%arg0: i32, %arg1: i32) -> (i32, i32) {
    %c0_i32 = arith.constant 0 : i32
    %c0_i32_0 = arith.constant 0 : i32
    %c0_i32_1 = arith.constant 0 : i32
    return %c0_i32, %c0_i32_0 : i32, i32
  }
  func.func @transform_3(%arg0: i32, %arg1: i32) -> (i32, i32) {
    %c0_i32 = arith.constant 0 : i32
    %c0_i32_0 = arith.constant 0 : i32
    %c0_i32_1 = arith.constant 0 : i32
    return %c0_i32, %c0_i32_0 : i32, i32
  }
  func.func @transform_4(%arg0: i32, %arg1: i32) -> (i32, i32) {
    %c0_i32 = arith.constant 0 : i32
    %c0_i32_0 = arith.constant 0 : i32
    %c0_i32_1 = arith.constant 0 : i32
    return %c0_i32, %c0_i32_0 : i32, i32
  }
  func.func @transform_5(%arg0: i32, %arg1: i32) -> (i32, i32) {
    %c0_i32 = arith.constant 0 : i32
    %c0_i32_0 = arith.constant 0 : i32
    %c0_i32_1 = arith.constant 0 : i32
    return %c0_i32, %c0_i32_0 : i32, i32
  }
  func.func @transform_6(%arg0: i32, %arg1: i32) -> (i32, i32, i32) {
    %c0_i32 = arith.constant 0 : i32
    %c0_i32_0 = arith.constant 0 : i32
    return %arg0, %c0_i32, %arg1 : i32, i32, i32
  }
  func.func @transform_7(%arg0: i32, %arg1: i32) -> (i32, i32, i32) {
    %c0_i32 = arith.constant 0 : i32
    %c0_i32_0 = arith.constant 0 : i32
    %c0_i32_1 = arith.constant 0 : i32
    return %arg0, %c0_i32, %c0_i32_0 : i32, i32, i32
  }
  func.func @transform_8(%arg0: i32, %arg1: i32) -> (i32, i32, i32) {
    %c0_i32 = arith.constant 0 : i32
    %c0_i32_0 = arith.constant 0 : i32
    %c0_i32_1 = arith.constant 0 : i32
    return %arg0, %c0_i32, %c0_i32_0 : i32, i32, i32
  }
}

</mosaic_0001>

<llo_original>
// kernel: adaptive_conv.3
$region0: #{adaptive_conv.3}
  #allocation0 [shape = 'u32[]', space=smem, size = 0x4, offset = 0x4, fixed_abs, tag = 'smem constant byte address 0x4 - core index']
  #allocation1 [shape = 'u32[144,128]{1,0:T(1,128)}', space=vmem, size = 0x12000, scoped, tag = 'internal scratch']
  %s0 = inlined_call_operand.vmem [shape: f32[2,32,128], index: 0, kind: input, shape index: {}]
  %s1 = inlined_call_operand.vmem [shape: f32[16,32], index: 1, kind: input, shape index: {}]
  %s2 = inlined_call_operand.vmem [shape: f32[1,16,1], index: 2, kind: output, shape index: {0}]
  %s3 = inlined_call_operand.vmem [shape: f32[1,16,1], index: 3, kind: output, shape index: {1}]
  %4 = xla_tuple %s2, %s3
  %s5 = sld [smem:[#allocation0]]
  $region30: #{adaptive_conv.3} parent=0
    _
  %s7 = ssub.s32 1, %s5
  %s8 = scalar_select 0, %s7, %s5
  // Predicated region
  $region2: #{adaptive_conv.3} parent=0 // pred_check
    _
  $region3: #{adaptive_conv.3} parent=0 // pred_check_branch
    %10 = sbr.rel (0) target = $region5
  $region4: #{adaptive_conv.3} parent=0 // pred_region
    _
  $region5: #{adaptive_conv.3} parent=0 // pred_fallthru
    _
  // Predicated region
  $region6: #{adaptive_conv.3} parent=0 // pred_check
    _
  $region7: #{adaptive_conv.3} parent=0 // pred_check_branch
    %12 = sbr.rel (0) target = $region9
  $region8: #{adaptive_conv.3} parent=0 // pred_region
    _
  $region9: #{adaptive_conv.3} parent=0 // pred_fallthru
    _
  %p13 = scmp.eq.s32.totalorder 0, 0
  // Predicated region
  $region10: #{adaptive_conv.3} parent=0 // pred_check
    %p14 = pneg %p13
  $region11: #{adaptive_conv.3} parent=0 // pred_check_branch
    %16 = sbr.rel (%p14) target = $region13
  $region12: #{adaptive_conv.3} parent=0 // pred_region
    %vm17 = vcmask 7168
    %18 = vst.msk [vmem:[%s2] sm:$0xff] %vm17, 0.0
    %19 = vst.msk [vmem:[%s2 + $0x8] sm:$0xff] %vm17, 0.0
    %20 = vst.msk [vmem:[%s3] sm:$0xff] %vm17, 0.0
    %21 = vst.msk [vmem:[%s3 + $0x8] sm:$0xff] %vm17, 0.0
  $region13: #{adaptive_conv.3} parent=0 // pred_fallthru
    _
  %v22 = vld [vmem:[%s1] sm:$0xff]
  %v23 = vld [vmem:[%s1 + $0x8] sm:$0xff]
  %v24 = vld [vmem:[%s0] sm:$0xff]
  %v25 = vld [vmem:[%s0 + $0x8] sm:$0xff]
  %v26 = vld [vmem:[%s0 + $0x10] sm:$0xff]
  %v27 = vld [vmem:[%s0 + $0x18] sm:$0xff]
  %vm28 = vcmask 261120
  %v30 = vsel %vm28, %v22, 0
  %v33 = vsel %vm28, %v23, 0
  %35 = vmatprep.subr.mxu0 0.0
  %36 = vmatpush1.msra.mxu0 %v24
  %37 = vmatprep.subr.mxu0 0.0
  %38 = vmatpush1.msra.mxu0 %v25
  %39 = vmatprep.subr.mxu0 0.0
  %40 = vmatpush1.msra.mxu0 %v26
  %41 = vmatprep.subr.mxu0 0.0
  %42 = vmatpush1.msra.mxu0 %v27
  %43 = vmatprep.subr.mxu0 0.0
  %44 = vmatpush1.msra.mxu0 0.0
  %45 = vmatprep.subr.mxu0 0.0
  %46 = vmatpush1.msra.mxu0 0.0
  %47 = vmatprep.subr.mxu0 0.0
  %48 = vmatpush1.msra.mxu0 0.0
  %49 = vmatprep.subr.mxu0 0.0
  %50 = vmatpush1.msra.mxu0 0.0
  %51 = vmatprep.subr.mxu0 0.0
  %52 = vmatpush1.msra.mxu0 0.0
  %53 = vmatprep.subr.mxu0 0.0
  %54 = vmatpush1.msra.mxu0 0.0
  %55 = vmatprep.subr.mxu0 0.0
  %56 = vmatpush1.msra.mxu0 0.0
  %57 = vmatprep.subr.mxu0 0.0
  %58 = vmatpush1.msra.mxu0 0.0
  %59 = vmatprep.subr.mxu0 0.0
  %60 = vmatpush1.msra.mxu0 0.0
  %61 = vmatprep.subr.mxu0 0.0
  %62 = vmatpush1.msra.mxu0 0.0
  %63 = vmatprep.subr.mxu0 0.0
  %64 = vmatpush1.msra.mxu0 0.0
  %65 = vmatprep.subr.mxu0 0.0
  %66 = vmatpush1.msra.mxu0 0.0
  %67 = vmatprep.subr.mxu0 0.0
  %68 = vmatpush1.msra.mxu0 0.0
  %69 = vmatprep.subr.mxu0 0.0
  %70 = vmatpush1.msra.mxu0 0.0
  %71 = vmatprep.subr.mxu0 0.0
  %72 = vmatpush1.msra.mxu0 0.0
  %73 = vmatprep.subr.mxu0 0.0
  %74 = vmatpush1.msra.mxu0 0.0
  %75 = vmatprep.subr.mxu0 0.0
  %76 = vmatpush1.msra.mxu0 0.0
  %77 = vmatprep.subr.mxu0 0.0
  %78 = vmatpush1.msra.mxu0 0.0
  %79 = vmatprep.subr.mxu0 0.0
  %80 = vmatpush1.msra.mxu0 0.0
  %81 = vmatprep.subr.mxu0 0.0
  %82 = vmatpush1.msra.mxu0 0.0
  %83 = vmatprep.subr.mxu0 0.0
  %84 = vmatpush1.msra.mxu0 0.0
  %85 = vmatprep.subr.mxu0 0.0
  %86 = vmatpush1.msra.mxu0 0.0
  %87 = vmatprep.subr.mxu0 0.0
  %88 = vmatpush1.msra.mxu0 0.0
  %89 = vmatprep.subr.mxu0 0.0
  %90 = vmatpush1.msra.mxu0 0.0
  %91 = vmatprep.subr.mxu0 0.0
  %92 = vmatpush1.msra.mxu0 0.0
  %93 = vmatprep.subr.mxu0 0.0
  %94 = vmatpush1.msra.mxu0 0.0
  %95 = vmatprep.subr.mxu0 0.0
  %96 = vmatpush1.msra.mxu0 0.0
  %97 = vmatprep.subr.mxu0 0.0
  %98 = vmatpush1.msra.mxu0 0.0
  %99 = vmatprep.mubr.f32.mxu0 0.0
  %100 = vmatmul.mubr.f32.gmra.mrb[0].mxu0 %v30
  %v101 = vpop.f32.mrb[0].mxu0
  %v102 = vadd.f32 0.0, %v101
  %v103 = vpop.f32.mrb[0].mxu0
  %104 = vmatprep.mubr.f32.mxu0 0.0
  %105 = vmatmul.mubr.f32.gmra.mrb[0].mxu0 %v33
  %v106 = vpop.f32.mrb[0].mxu0
  %v107 = vadd.f32 0.0, %v106
  %v108 = vpop.f32.mrb[0].mxu0
  %109 = vdwg.mxu0
  %110 = vadd.xlane.f32.xlu0 %v102
  %v111 = vpop.xlane.xlu0 %110
  %112 = vadd.xlane.f32.xlu0 %v107
  %v113 = vpop.xlane.xlu0 %112
  %v114 = vadd.f32 %v111, 0.0
  %v115 = vadd.f32 %v113, 0.0
  %v116 = vmul.f32 %v102, %v102
  %v117 = vmul.f32 %v107, %v107
  %118 = vadd.xlane.f32.xlu0 %v116
  %v119 = vpop.xlane.xlu0 %118
  %120 = vadd.xlane.f32.xlu0 %v117
  %v121 = vpop.xlane.xlu0 %120
  %v122 = vadd.f32 %v119, 0.0
  %v123 = vadd.f32 %v121, 0.0
  %s124 = scalar_lea.vmem %s0, 32
  %v125 = vld [vmem:[%s124] sm:$0xff]
  %v126 = vld [vmem:[%s124 + $0x8] sm:$0xff]
  %v127 = vld [vmem:[%s124 + $0x10] sm:$0xff]
  %v128 = vld [vmem:[%s124 + $0x18] sm:$0xff]
  %129 = vmatprep.subr.mxu0 0.0
  %130 = vmatpush1.msra.mxu0 %v125
  %131 = vmatprep.subr.mxu0 0.0
  %132 = vmatpush1.msra.mxu0 %v126
  %133 = vmatprep.subr.mxu0 0.0
  %134 = vmatpush1.msra.mxu0 %v127
  %135 = vmatprep.subr.mxu0 0.0
  %136 = vmatpush1.msra.mxu0 %v128
  %137 = vmatprep.subr.mxu0 0.0
  %138 = vmatpush1.msra.mxu0 0.0
  %139 = vmatprep.subr.mxu0 0.0
  %140 = vmatpush1.msra.mxu0 0.0
  %141 = vmatprep.subr.mxu0 0.0
  %142 = vmatpush1.msra.mxu0 0.0
  %143 = vmatprep.subr.mxu0 0.0
  %144 = vmatpush1.msra.mxu0 0.0
  %145 = vmatprep.subr.mxu0 0.0
  %146 = vmatpush1.msra.mxu0 0.0
  %147 = vmatprep.subr.mxu0 0.0
  %148 = vmatpush1.msra.mxu0 0.0
  %149 = vmatprep.subr.mxu0 0.0
  %150 = vmatpush1.msra.mxu0 0.0
  %151 = vmatprep.subr.mxu0 0.0
  %152 = vmatpush1.msra.mxu0 0.0
  %153 = vmatprep.subr.mxu0 0.0
  %154 = vmatpush1.msra.mxu0 0.0
  %155 = vmatprep.subr.mxu0 0.0
  %156 = vmatpush1.msra.mxu0 0.0
  %157 = vmatprep.subr.mxu0 0.0
  %158 = vmatpush1.msra.mxu0 0.0
  %159 = vmatprep.subr.mxu0 0.0
  %160 = vmatpush1.msra.mxu0 0.0
  %161 = vmatprep.subr.mxu0 0.0
  %162 = vmatpush1.msra.mxu0 0.0
  %163 = vmatprep.subr.mxu0 0.0
  %164 = vmatpush1.msra.mxu0 0.0
  %165 = vmatprep.subr.mxu0 0.0
  %166 = vmatpush1.msra.mxu0 0.0
  %167 = vmatprep.subr.mxu0 0.0
  %168 = vmatpush1.msra.mxu0 0.0
  %169 = vmatprep.subr.mxu0 0.0
  %170 = vmatpush1.msra.mxu0 0.0
  %171 = vmatprep.subr.mxu0 0.0
  %172 = vmatpush1.msra.mxu0 0.0
  %173 = vmatprep.subr.mxu0 0.0
  %174 = vmatpush1.msra.mxu0 0.0
  %175 = vmatprep.subr.mxu0 0.0
  %176 = vmatpush1.msra.mxu0 0.0
  %177 = vmatprep.subr.mxu0 0.0
  %178 = vmatpush1.msra.mxu0 0.0
  %179 = vmatprep.subr.mxu0 0.0
  %180 = vmatpush1.msra.mxu0 0.0
  %181 = vmatprep.subr.mxu0 0.0
  %182 = vmatpush1.msra.mxu0 0.0
  %183 = vmatprep.subr.mxu0 0.0
  %184 = vmatpush1.msra.mxu0 0.0
  %185 = vmatprep.subr.mxu0 0.0
  %186 = vmatpush1.msra.mxu0 0.0
  %187 = vmatprep.subr.mxu0 0.0
  %188 = vmatpush1.msra.mxu0 0.0
  %189 = vmatprep.subr.mxu0 0.0
  %190 = vmatpush1.msra.mxu0 0.0
  %191 = vmatprep.subr.mxu0 0.0
  %192 = vmatpush1.msra.mxu0 0.0
  %193 = vmatprep.mubr.f32.mxu0 0.0
  %194 = vmatmul.mubr.f32.gmra.mrb[0].mxu0 %v30
  %v195 = vpop.f32.mrb[0].mxu0
  %v196 = vadd.f32 0.0, %v195
  %v197 = vpop.f32.mrb[0].mxu0
  %198 = vmatprep.mubr.f32.mxu0 0.0
  %199 = vmatmul.mubr.f32.gmra.mrb[0].mxu0 %v33
  %v200 = vpop.f32.mrb[0].mxu0
  %v201 = vadd.f32 0.0, %v200
  %v202 = vpop.f32.mrb[0].mxu0
  %203 = vdwg.mxu0
  %204 = vadd.xlane.f32.xlu0 %v196
  %v205 = vpop.xlane.xlu0 %204
  %206 = vadd.xlane.f32.xlu0 %v201
  %v207 = vpop.xlane.xlu0 %206
  %v208 = vadd.f32 %v114, %v205
  %v209 = vadd.f32 %v115, %v207
  %v210 = vmul.f32 %v196, %v196
  %v211 = vmul.f32 %v201, %v201
  %212 = vadd.xlane.f32.xlu0 %v210
  %v213 = vpop.xlane.xlu0 %212
  %214 = vadd.xlane.f32.xlu0 %v211
  %v215 = vpop.xlane.xlu0 %214
  %v216 = vadd.f32 %v122, %v213
  %v217 = vadd.f32 %v123, %v215
  %v218 = vld [vmem:[%s2] sm:$0xff]
  %v219 = vld [vmem:[%s2 + $0x8] sm:$0xff]
  %v220 = vadd.f32 %v218, %v208
  %v221 = vadd.f32 %v219, %v209
  %vm222 = vcmask 7168
  %223 = vst.msk [vmem:[%s2] sm:$0xff] %vm222, %v220
  %224 = vst.msk [vmem:[%s2 + $0x8] sm:$0xff] %vm222, %v221
  %v225 = vld [vmem:[%s3] sm:$0xff]
  %v226 = vld [vmem:[%s3 + $0x8] sm:$0xff]
  %v227 = vadd.f32 %v225, %v216
  %v228 = vadd.f32 %v226, %v217
  %229 = vst.msk [vmem:[%s3] sm:$0xff] %vm222, %v227
  %230 = vst.msk [vmem:[%s3 + $0x8] sm:$0xff] %vm222, %v228
  // Predicated region
  $region14: #{adaptive_conv.3} parent=0 // pred_check
    _
  $region15: #{adaptive_conv.3} parent=0 // pred_check_branch
    %232 = sbr.rel (0) target = $region17
  $region16: #{adaptive_conv.3} parent=0 // pred_region
    _
  $region17: #{adaptive_conv.3} parent=0 // pred_fallthru
    _
  // Predicated region
  $region18: #{adaptive_conv.3} parent=0 // pred_check
    _
  $region19: #{adaptive_conv.3} parent=0 // pred_check_branch
    %234 = sbr.rel (0) target = $region21
  $region20: #{adaptive_conv.3} parent=0 // pred_region
    _
  $region21: #{adaptive_conv.3} parent=0 // pred_fallthru
    _
  // Predicated region
  $region22: #{adaptive_conv.3} parent=0 // pred_check
    _
  $region23: #{adaptive_conv.3} parent=0 // pred_check_branch
    %236 = sbr.rel (0) target = $region25
  $region24: #{adaptive_conv.3} parent=0 // pred_region
    _
  $region25: #{adaptive_conv.3} parent=0 // pred_fallthru
    _
  // Predicated region
  $region26: #{adaptive_conv.3} parent=0 // pred_check
    _
  $region27: #{adaptive_conv.3} parent=0 // pred_check_branch
    %238 = sbr.rel (0) target = $region29
  $region28: #{adaptive_conv.3} parent=0 // pred_region
    _
  $region29: #{adaptive_conv.3} parent=0 // pred_fallthru
    _

// kernel: adaptive_conv.5
$region0: #{adaptive_conv.5}
  #allocation0 [shape = 'u32[]', space=smem, size = 0x4, offset = 0x4, fixed_abs, tag = 'smem constant byte address 0x4 - core index']
  #allocation1 [shape = 'u32[144,128]{1,0:T(1,128)}', space=vmem, size = 0x12000, scoped, tag = 'internal scratch']
  %s0 = inlined_call_operand.vmem [shape: bf16[2,16,128], index: 0, kind: input, shape index: {}]
  %s1 = inlined_call_operand.vmem [shape: f32[16,1], index: 1, kind: input, shape index: {}]
  %s2 = inlined_call_operand.vmem [shape: f32[16,1], index: 2, kind: input, shape index: {}]
  %s3 = inlined_call_operand.vmem [shape: f32[2,16,128], index: 3, kind: output, shape index: {}]
  %s4 = sld [smem:[#allocation0]]
  $region22: #{adaptive_conv.5} parent=0
    _
  %s6 = ssub.s32 1, %s4
  %s7 = scalar_select 0, %s6, %s4
  // Predicated region
  $region2: #{adaptive_conv.5} parent=0 // pred_check
    _
  $region3: #{adaptive_conv.5} parent=0 // pred_check_branch
    %9 = sbr.rel (0) target = $region5
  $region4: #{adaptive_conv.5} parent=0 // pred_region
    _
  $region5: #{adaptive_conv.5} parent=0 // pred_fallthru
    _
  // Predicated region
  $region6: #{adaptive_conv.5} parent=0 // pred_check
    _
  $region7: #{adaptive_conv.5} parent=0 // pred_check_branch
    %11 = sbr.rel (0) target = $region9
  $region8: #{adaptive_conv.5} parent=0 // pred_region
    _
  $region9: #{adaptive_conv.5} parent=0 // pred_fallthru
    _
  // Predicated region
  $region10: #{adaptive_conv.5} parent=0 // pred_check
    _
  $region11: #{adaptive_conv.5} parent=0 // pred_check_branch
    %13 = sbr.rel (0) target = $region13
  $region12: #{adaptive_conv.5} parent=0 // pred_region
    _
  $region13: #{adaptive_conv.5} parent=0 // pred_fallthru
    _
  %v14 = vld [vmem:[%s0] sm:$0xf]
  %v15 = vld [vmem:[%s0 + $0x4] sm:$0xf]
  %v16 = vld [vmem:[%s0 + $0x8] sm:$0xf]
  %v17 = vld [vmem:[%s0 + $0xc] sm:$0xf]
  %v18 = vunpack.c.l.bf16 %v14
  %v19 = vunpack.c.l.bf16 %v15
  %v20 = vunpack.c.l.bf16 %v16
  %v21 = vunpack.c.l.bf16 %v17
  %v22 = vld [vmem:[%s1] sm:$0xff]
  %v23 = vld [vmem:[%s1 + $0x8] sm:$0xff]
  %25 = vset.pattern.permute.xlu0 0
  %26 = vperm.xlu0 %25, %v22
  %v27 = vpop.permute.xlu0 %26
  %30 = vset.pattern.permute.xlu0 0
  %31 = vperm.xlu0 %30, %v23
  %v32 = vpop.permute.xlu0 %31
  %v34 = vmul.f32 %v18, %v27
  %v35 = vmul.f32 %v19, %v32
  %v36 = vmul.f32 %v20, %v27
  %v37 = vmul.f32 %v21, %v32
  %v38 = vld [vmem:[%s2] sm:$0xff]
  %v39 = vld [vmem:[%s2 + $0x8] sm:$0xff]
  %41 = vset.pattern.permute.xlu0 0
  %42 = vperm.xlu0 %41, %v38
  %v43 = vpop.permute.xlu0 %42
  %46 = vset.pattern.permute.xlu0 0
  %47 = vperm.xlu0 %46, %v39
  %v48 = vpop.permute.xlu0 %47
  %v50 = vadd.f32 %v34, %v43
  %v51 = vadd.f32 %v35, %v48
  %v52 = vadd.f32 %v36, %v43
  %v53 = vadd.f32 %v37, %v48
  %vm54 = vcmp.ge.f32.partialorder %v50, 0.0
  %vm55 = vcmp.ge.f32.partialorder %v51, 0.0
  %vm56 = vcmp.ge.f32.partialorder %v52, 0.0
  %vm57 = vcmp.ge.f32.partialorder %v53, 0.0
  %v58 = vmul.f32 %v50, 0.2
  %v59 = vmul.f32 %v51, 0.2
  %v60 = vmul.f32 %v52, 0.2
  %v61 = vmul.f32 %v53, 0.2
  %v62 = vsel %vm54, %v50, %v58
  %v63 = vsel %vm55, %v51, %v59
  %v64 = vsel %vm56, %v52, %v60
  %v65 = vsel %vm57, %v53, %v61
  %66 = vst [vmem:[%s3] sm:$0xff] %v62
  %67 = vst [vmem:[%s3 + $0x8] sm:$0xff] %v63
  %68 = vst [vmem:[%s3 + $0x10] sm:$0xff] %v64
  %69 = vst [vmem:[%s3 + $0x18] sm:$0xff] %v65
  // Predicated region
  $region14: #{adaptive_conv.5} parent=0 // pred_check
    _
  $region15: #{adaptive_conv.5} parent=0 // pred_check_branch
    %71 = sbr.rel (0) target = $region17
  $region16: #{adaptive_conv.5} parent=0 // pred_region
    _
  $region17: #{adaptive_conv.5} parent=0 // pred_fallthru
    _
  // Predicated region
  $region18: #{adaptive_conv.5} parent=0 // pred_check
    _
  $region19: #{adaptive_conv.5} parent=0 // pred_check_branch
    %73 = sbr.rel (0) target = $region21
  $region20: #{adaptive_conv.5} parent=0 // pred_region
    _
  $region21: #{adaptive_conv.5} parent=0 // pred_fallthru
    _

// kernel: adaptive_conv.4
$region0: #{adaptive_conv.4}
  #allocation0 [shape = 'u32[]', space=smem, size = 0x4, offset = 0x4, fixed_abs, tag = 'smem constant byte address 0x4 - core index']
  #allocation1 [shape = 'u32[144,128]{1,0:T(1,128)}', space=vmem, size = 0x12000, scoped, tag = 'internal scratch']
  %s0 = inlined_call_operand.vmem [shape: f32[2,32,128], index: 0, kind: input, shape index: {}]
  %s1 = inlined_call_operand.vmem [shape: f32[2,4,128], index: 1, kind: input, shape index: {}]
  %s2 = inlined_call_operand.vmem [shape: f32[16,32], index: 2, kind: input, shape index: {}]
  %s3 = inlined_call_operand.vmem [shape: f32[64,16], index: 3, kind: input, shape index: {}]
  %s4 = inlined_call_operand.vmem [shape: f32[16,1], index: 4, kind: input, shape index: {}]
  %s5 = inlined_call_operand.vmem [shape: f32[16,1], index: 5, kind: input, shape index: {}]
  %s6 = inlined_call_operand.vmem [shape: bf16[2,16,128], index: 6, kind: output, shape index: {0}]
  %s7 = inlined_call_operand.vmem [shape: f32[1,16,1], index: 7, kind: output, shape index: {1}]
  %s8 = inlined_call_operand.vmem [shape: f32[1,16,1], index: 8, kind: output, shape index: {2}]
  %9 = xla_tuple %s6, %s7, %s8
  %s10 = sld [smem:[#allocation0]]
  $region54: #{adaptive_conv.4} parent=0
    _
  %s12 = ssub.s32 1, %s10
  %s13 = scalar_select 0, %s12, %s10
  // Predicated region
  $region2: #{adaptive_conv.4} parent=0 // pred_check
    _
  $region3: #{adaptive_conv.4} parent=0 // pred_check_branch
    %15 = sbr.rel (0) target = $region5
  $region4: #{adaptive_conv.4} parent=0 // pred_region
    _
  $region5: #{adaptive_conv.4} parent=0 // pred_fallthru
    _
  // Predicated region
  $region6: #{adaptive_conv.4} parent=0 // pred_check
    _
  $region7: #{adaptive_conv.4} parent=0 // pred_check_branch
    %17 = sbr.rel (0) target = $region9
  $region8: #{adaptive_conv.4} parent=0 // pred_region
    _
  $region9: #{adaptive_conv.4} parent=0 // pred_fallthru
    _
  // Predicated region
  $region10: #{adaptive_conv.4} parent=0 // pred_check
    _
  $region11: #{adaptive_conv.4} parent=0 // pred_check_branch
    %19 = sbr.rel (0) target = $region13
  $region12: #{adaptive_conv.4} parent=0 // pred_region
    _
  $region13: #{adaptive_conv.4} parent=0 // pred_fallthru
    _
  // Predicated region
  $region14: #{adaptive_conv.4} parent=0 // pred_check
    _
  $region15: #{adaptive_conv.4} parent=0 // pred_check_branch
    %21 = sbr.rel (0) target = $region17
  $region16: #{adaptive_conv.4} parent=0 // pred_region
    _
  $region17: #{adaptive_conv.4} parent=0 // pred_fallthru
    _
  // Predicated region
  $region18: #{adaptive_conv.4} parent=0 // pred_check
    _
  $region19: #{adaptive_conv.4} parent=0 // pred_check_branch
    %23 = sbr.rel (0) target = $region21
  $region20: #{adaptive_conv.4} parent=0 // pred_region
    _
  $region21: #{adaptive_conv.4} parent=0 // pred_fallthru
    _
  // Predicated region
  $region22: #{adaptive_conv.4} parent=0 // pred_check
    _
  $region23: #{adaptive_conv.4} parent=0 // pred_check_branch
    %25 = sbr.rel (0) target = $region25
  $region24: #{adaptive_conv.4} parent=0 // pred_region
    _
  $region25: #{adaptive_conv.4} parent=0 // pred_fallthru
    _
  %p26 = scmp.eq.s32.totalorder 0, 0
  // Predicated region
  $region26: #{adaptive_conv.4} parent=0 // pred_check
    %p27 = pneg %p26
  $region27: #{adaptive_conv.4} parent=0 // pred_check_branch
    %29 = sbr.rel (%p27) target = $region29
  $region28: #{adaptive_conv.4} parent=0 // pred_region
    %vm30 = vcmask 7168
    %31 = vst.msk [vmem:[%s7] sm:$0xff] %vm30, 0.0
    %32 = vst.msk [vmem:[%s7 + $0x8] sm:$0xff] %vm30, 0.0
    %33 = vst.msk [vmem:[%s8] sm:$0xff] %vm30, 0.0
    %34 = vst.msk [vmem:[%s8 + $0x8] sm:$0xff] %vm30, 0.0
  $region29: #{adaptive_conv.4} parent=0 // pred_fallthru
    _
  %v35 = vld [vmem:[%s2] sm:$0xff]
  %v36 = vld [vmem:[%s2 + $0x8] sm:$0xff]
  %v37 = vld [vmem:[%s3] sm:$0xff]
  %v38 = vld [vmem:[%s3 + $0x8] sm:$0xff]
  %v39 = vld [vmem:[%s3 + $0x10] sm:$0xff]
  %v40 = vld [vmem:[%s3 + $0x18] sm:$0xff]
  %v41 = vld [vmem:[%s3 + $0x20] sm:$0xff]
  %v42 = vld [vmem:[%s3 + $0x28] sm:$0xff]
  %v43 = vld [vmem:[%s3 + $0x30] sm:$0xff]
  %v44 = vld [vmem:[%s3 + $0x38] sm:$0xff]
  %v45 = vld [vmem:[%s4] sm:$0xff]
  %v46 = vld [vmem:[%s4 + $0x8] sm:$0xff]
  %v47 = vld [vmem:[%s5] sm:$0xff]
  %v48 = vld [vmem:[%s5 + $0x8] sm:$0xff]
  %v49 = vld [vmem:[%s0] sm:$0xff]
  %v50 = vld [vmem:[%s0 + $0x8] sm:$0xff]
  %v51 = vld [vmem:[%s0 + $0x10] sm:$0xff]
  %v52 = vld [vmem:[%s0 + $0x18] sm:$0xff]
  %vm53 = vcmask 261120
  %v55 = vsel %vm53, %v35, 0
  %v58 = vsel %vm53, %v36, 0
  %60 = vmatprep.subr.mxu0 0.0
  %61 = vmatpush1.msra.mxu0 %v49
  %62 = vmatprep.subr.mxu0 0.0
  %63 = vmatpush1.msra.mxu0 %v50
  %64 = vmatprep.subr.mxu0 0.0
  %65 = vmatpush1.msra.mxu0 %v51
  %66 = vmatprep.subr.mxu0 0.0
  %67 = vmatpush1.msra.mxu0 %v52
  %68 = vmatprep.subr.mxu0 0.0
  %69 = vmatpush1.msra.mxu0 0.0
  %70 = vmatprep.subr.mxu0 0.0
  %71 = vmatpush1.msra.mxu0 0.0
  %72 = vmatprep.subr.mxu0 0.0
  %73 = vmatpush1.msra.mxu0 0.0
  %74 = vmatprep.subr.mxu0 0.0
  %75 = vmatpush1.msra.mxu0 0.0
  %76 = vmatprep.subr.mxu0 0.0
  %77 = vmatpush1.msra.mxu0 0.0
  %78 = vmatprep.subr.mxu0 0.0
  %79 = vmatpush1.msra.mxu0 0.0
  %80 = vmatprep.subr.mxu0 0.0
  %81 = vmatpush1.msra.mxu0 0.0
  %82 = vmatprep.subr.mxu0 0.0
  %83 = vmatpush1.msra.mxu0 0.0
  %84 = vmatprep.subr.mxu0 0.0
  %85 = vmatpush1.msra.mxu0 0.0
  %86 = vmatprep.subr.mxu0 0.0
  %87 = vmatpush1.msra.mxu0 0.0
  %88 = vmatprep.subr.mxu0 0.0
  %89 = vmatpush1.msra.mxu0 0.0
  %90 = vmatprep.subr.mxu0 0.0
  %91 = vmatpush1.msra.mxu0 0.0
  %92 = vmatprep.subr.mxu0 0.0
  %93 = vmatpush1.msra.mxu0 0.0
  %94 = vmatprep.subr.mxu0 0.0
  %95 = vmatpush1.msra.mxu0 0.0
  %96 = vmatprep.subr.mxu0 0.0
  %97 = vmatpush1.msra.mxu0 0.0
  %98 = vmatprep.subr.mxu0 0.0
  %99 = vmatpush1.msra.mxu0 0.0
  %100 = vmatprep.subr.mxu0 0.0
  %101 = vmatpush1.msra.mxu0 0.0
  %102 = vmatprep.subr.mxu0 0.0
  %103 = vmatpush1.msra.mxu0 0.0
  %104 = vmatprep.subr.mxu0 0.0
  %105 = vmatpush1.msra.mxu0 0.0
  %106 = vmatprep.subr.mxu0 0.0
  %107 = vmatpush1.msra.mxu0 0.0
  %108 = vmatprep.subr.mxu0 0.0
  %109 = vmatpush1.msra.mxu0 0.0
  %110 = vmatprep.subr.mxu0 0.0
  %111 = vmatpush1.msra.mxu0 0.0
  %112 = vmatprep.subr.mxu0 0.0
  %113 = vmatpush1.msra.mxu0 0.0
  %114 = vmatprep.subr.mxu0 0.0
  %115 = vmatpush1.msra.mxu0 0.0
  %116 = vmatprep.subr.mxu0 0.0
  %117 = vmatpush1.msra.mxu0 0.0
  %118 = vmatprep.subr.mxu0 0.0
  %119 = vmatpush1.msra.mxu0 0.0
  %120 = vmatprep.subr.mxu0 0.0
  %121 = vmatpush1.msra.mxu0 0.0
  %122 = vmatprep.subr.mxu0 0.0
  %123 = vmatpush1.msra.mxu0 0.0
  %124 = vmatprep.mubr.f32.mxu0 0.0
  %125 = vmatmul.mubr.f32.gmra.mrb[0].mxu0 %v55
  %v126 = vpop.f32.mrb[0].mxu0
  %v127 = vadd.f32 0.0, %v126
  %v128 = vpop.f32.mrb[0].mxu0
  %129 = vmatprep.mubr.f32.mxu0 0.0
  %130 = vmatmul.mubr.f32.gmra.mrb[0].mxu0 %v58
  %v131 = vpop.f32.mrb[0].mxu0
  %v132 = vadd.f32 0.0, %v131
  %v133 = vpop.f32.mrb[0].mxu0
  %134 = vdwg.mxu0
  %136 = vset.pattern.permute.xlu0 0
  %137 = vperm.xlu0 %136, %v45
  %v138 = vpop.permute.xlu0 %137
  %141 = vset.pattern.permute.xlu0 0
  %142 = vperm.xlu0 %141, %v46
  %v143 = vpop.permute.xlu0 %142
  %v145 = vmul.f32 %v127, %v138
  %v146 = vmul.f32 %v132, %v143
  %148 = vset.pattern.permute.xlu0 0
  %149 = vperm.xlu0 %148, %v47
  %v150 = vpop.permute.xlu0 %149
  %153 = vset.pattern.permute.xlu0 0
  %154 = vperm.xlu0 %153, %v48
  %v155 = vpop.permute.xlu0 %154
  %v157 = vadd.f32 %v145, %v150
  %v158 = vadd.f32 %v146, %v155
  %vm159 = vcmp.ge.f32.partialorder %v157, 0.0
  %vm160 = vcmp.ge.f32.partialorder %v158, 0.0
  %v161 = vmul.f32 %v157, 0.2
  %v162 = vmul.f32 %v158, 0.2
  %v163 = vsel %vm159, %v157, %v161
  %v164 = vsel %vm160, %v158, %v162
  %vm165 = vcmask 130048
  %v167 = vsel %vm165, %v37, 0
  %v170 = vsel %vm165, %v38, 0
  %v173 = vsel %vm165, %v39, 0
  %v176 = vsel %vm165, %v40, 0
  %v179 = vsel %vm165, %v41, 0
  %v182 = vsel %vm165, %v42, 0
  %v185 = vsel %vm165, %v43, 0
  %v188 = vsel %vm165, %v44, 0
  %190 = vmatprep.subr.mxu0 0.0
  %191 = vmatpush1.msra.mxu0 %v163
  %192 = vmatprep.subr.mxu0 0.0
  %193 = vmatpush1.msra.mxu0 %v164
  %194 = vmatprep.subr.mxu0 0.0
  %195 = vmatpush1.msra.mxu0 0.0
  %196 = vmatprep.subr.mxu0 0.0
  %197 = vmatpush1.msra.mxu0 0.0
  %198 = vmatprep.subr.mxu0 0.0
  %199 = vmatpush1.msra.mxu0 0.0
  %200 = vmatprep.subr.mxu0 0.0
  %201 = vmatpush1.msra.mxu0 0.0
  %202 = vmatprep.subr.mxu0 0.0
  %203 = vmatpush1.msra.mxu0 0.0
  %204 = vmatprep.subr.mxu0 0.0
  %205 = vmatpush1.msra.mxu0 0.0
  %206 = vmatprep.subr.mxu0 0.0
  %207 = vmatpush1.msra.mxu0 0.0
  %208 = vmatprep.subr.mxu0 0.0
  %209 = vmatpush1.msra.mxu0 0.0
  %210 = vmatprep.subr.mxu0 0.0
  %211 = vmatpush1.msra.mxu0 0.0
  %212 = vmatprep.subr.mxu0 0.0
  %213 = vmatpush1.msra.mxu0 0.0
  %214 = vmatprep.subr.mxu0 0.0
  %215 = vmatpush1.msra.mxu0 0.0
  %216 = vmatprep.subr.mxu0 0.0
  %217 = vmatpush1.msra.mxu0 0.0
  %218 = vmatprep.subr.mxu0 0.0
  %219 = vmatpush1.msra.mxu0 0.0
  %220 = vmatprep.subr.mxu0 0.0
  %221 = vmatpush1.msra.mxu0 0.0
  %222 = vmatprep.subr.mxu0 0.0
  %223 = vmatpush1.msra.mxu0 0.0
  %224 = vmatprep.subr.mxu0 0.0
  %225 = vmatpush1.msra.mxu0 0.0
  %226 = vmatprep.subr.mxu0 0.0
  %227 = vmatpush1.msra.mxu0 0.0
  %228 = vmatprep.subr.mxu0 0.0
  %229 = vmatpush1.msra.mxu0 0.0
  %230 = vmatprep.subr.mxu0 0.0
  %231 = vmatpush1.msra.mxu0 0.0
  %232 = vmatprep.subr.mxu0 0.0
  %233 = vmatpush1.msra.mxu0 0.0
  %234 = vmatprep.subr.mxu0 0.0
  %235 = vmatpush1.msra.mxu0 0.0
  %236 = vmatprep.subr.mxu0 0.0
  %237 = vmatpush1.msra.mxu0 0.0
  %238 = vmatprep.subr.mxu0 0.0
  %239 = vmatpush1.msra.mxu0 0.0
  %240 = vmatprep.subr.mxu0 0.0
  %241 = vmatpush1.msra.mxu0 0.0
  %242 = vmatprep.subr.mxu0 0.0
  %243 = vmatpush1.msra.mxu0 0.0
  %244 = vmatprep.subr.mxu0 0.0
  %245 = vmatpush1.msra.mxu0 0.0
  %246 = vmatprep.subr.mxu0 0.0
  %247 = vmatpush1.msra.mxu0 0.0
  %248 = vmatprep.subr.mxu0 0.0
  %249 = vmatpush1.msra.mxu0 0.0
  %250 = vmatprep.subr.mxu0 0.0
  %251 = vmatpush1.msra.mxu0 0.0
  %252 = vmatprep.subr.mxu0 0.0
  %253 = vmatpush1.msra.mxu0 0.0
  %254 = vmatprep.mubr.f32.mxu0 0.0
  %255 = vmatmul.mubr.f32.gmra.mrb[0].mxu0 %v167
  %v256 = vpop.f32.mrb[0].mxu0
  %v257 = vadd.f32 0.0, %v256
  %v258 = vpop.f32.mrb[0].mxu0
  %259 = vmatprep.mubr.f32.mxu0 0.0
  %260 = vmatmul.mubr.f32.gmra.mrb[0].mxu0 %v170
  %v261 = vpop.f32.mrb[0].mxu0
  %v262 = vadd.f32 0.0, %v261
  %v263 = vpop.f32.mrb[0].mxu0
  %264 = vmatprep.mubr.f32.mxu0 0.0
  %265 = vmatmul.mubr.f32.gmra.mrb[0].mxu0 %v173
  %v266 = vpop.f32.mrb[0].mxu0
  %v267 = vadd.f32 0.0, %v266
  %v268 = vpop.f32.mrb[0].mxu0
  %269 = vmatprep.mubr.f32.mxu0 0.0
  %270 = vmatmul.mubr.f32.gmra.mrb[0].mxu0 %v176
  %v271 = vpop.f32.mrb[0].mxu0
  %v272 = vadd.f32 0.0, %v271
  %v273 = vpop.f32.mrb[0].mxu0
  %274 = vmatprep.mubr.f32.mxu0 0.0
  %275 = vmatmul.mubr.f32.gmra.mrb[0].mxu0 %v179
  %v276 = vpop.f32.mrb[0].mxu0
  %v277 = vadd.f32 0.0, %v276
  %v278 = vpop.f32.mrb[0].mxu0
  %279 = vmatprep.mubr.f32.mxu0 0.0
  %280 = vmatmul.mubr.f32.gmra.mrb[0].mxu0 %v182
  %v281 = vpop.f32.mrb[0].mxu0
  %v282 = vadd.f32 0.0, %v281
  %v283 = vpop.f32.mrb[0].mxu0
  %284 = vmatprep.mubr.f32.mxu0 0.0
  %285 = vmatmul.mubr.f32.gmra.mrb[0].mxu0 %v185
  %v286 = vpop.f32.mrb[0].mxu0
  %v287 = vadd.f32 0.0, %v286
  %v288 = vpop.f32.mrb[0].mxu0
  %289 = vmatprep.mubr.f32.mxu0 0.0
  %290 = vmatmul.mubr.f32.gmra.mrb[0].mxu0 %v188
  %v291 = vpop.f32.mrb[0].mxu0
  %v292 = vadd.f32 0.0, %v291
  %v293 = vpop.f32.mrb[0].mxu0
  %294 = vdwg.mxu0
  %v295 = vld [vmem:[%s1] sm:$0xf]
  %v296 = vlaneseq
  %v297 = vshrl.u32 %v296, 7
  %v298 = vsub.s32 0, %v297
  %v299 = vrot.slane %v295, %v298
  %v300 = vmul.f32 %v257, %v299
  %v301 = vmul.f32 %v262, %v299
  %v302 = vlaneseq
  %v303 = vshrl.u32 %v302, 7
  %v304 = vsub.s32 1, %v303
  %v305 = vrot.slane %v295, %v304
  %v306 = vmul.f32 %v267, %v305
  %v307 = vmul.f32 %v272, %v305
  %v308 = vadd.f32 %v300, %v306
  %v309 = vadd.f32 %v301, %v307
  %v310 = vlaneseq
  %v311 = vshrl.u32 %v310, 7
  %v312 = vsub.s32 2, %v311
  %v313 = vrot.slane %v295, %v312
  %v314 = vmul.f32 %v277, %v313
  %v315 = vmul.f32 %v282, %v313
  %v316 = vadd.f32 %v308, %v314
  %v317 = vadd.f32 %v309, %v315
  %v318 = vlaneseq
  %v319 = vshrl.u32 %v318, 7
  %v320 = vsub.s32 3, %v319
  %v321 = vrot.slane %v295, %v320
  %v322 = vmul.f32 %v287, %v321
  %v323 = vmul.f32 %v292, %v321
  %v324 = vadd.f32 %v316, %v322
  %v325 = vadd.f32 %v317, %v323
  %v326 = vpack.c.bf16 %v325, %v324
  %v328 = vunpack.c.l.b16 %v326
  %v329 = vunpack.c.h.b16 %v326
  %v330 = vpack.c.b16 %v328, %v328
  %v331 = vpack.c.b16 %v329, %v329
  %334 = vst [vmem:[%s6] sm:$0xf] %v330
  %335 = vst [vmem:[%s6 + $0x4] sm:$0xf] %v331
  %336 = vadd.xlane.f32.xlu0 %v324
  %v337 = vpop.xlane.xlu0 %336
  %338 = vadd.xlane.f32.xlu0 %v325
  %v339 = vpop.xlane.xlu0 %338
  %v340 = vadd.f32 %v337, 0.0
  %v341 = vadd.f32 %v339, 0.0
  %v342 = vmul.f32 %v324, %v324
  %v343 = vmul.f32 %v325, %v325
  %344 = vadd.xlane.f32.xlu0 %v342
  %v345 = vpop.xlane.xlu0 %344
  %346 = vadd.xlane.f32.xlu0 %v343
  %v347 = vpop.xlane.xlu0 %346
  %v348 = vadd.f32 %v345, 0.0
  %v349 = vadd.f32 %v347, 0.0
  %s350 = scalar_lea.vmem %s0, 32
  %v351 = vld [vmem:[%s350] sm:$0xff]
  %v352 = vld [vmem:[%s350 + $0x8] sm:$0xff]
  %v353 = vld [vmem:[%s350 + $0x10] sm:$0xff]
  %v354 = vld [vmem:[%s350 + $0x18] sm:$0xff]
  %355 = vmatprep.subr.mxu0 0.0
  %356 = vmatpush1.msra.mxu0 %v351
  %357 = vmatprep.subr.mxu0 0.0
  %358 = vmatpush1.msra.mxu0 %v352
  %359 = vmatprep.subr.mxu0 0.0
  %360 = vmatpush1.msra.mxu0 %v353
  %361 = vmatprep.subr.mxu0 0.0
  %362 = vmatpush1.msra.mxu0 %v354
  %363 = vmatprep.subr.mxu0 0.0
  %364 = vmatpush1.msra.mxu0 0.0
  %365 = vmatprep.subr.mxu0 0.0
  %366 = vmatpush1.msra.mxu0 0.0
  %367 = vmatprep.subr.mxu0 0.0
  %368 = vmatpush1.msra.mxu0 0.0
  %369 = vmatprep.subr.mxu0 0.0
  %370 = vmatpush1.msra.mxu0 0.0
  %371 = vmatprep.subr.mxu0 0.0
  %372 = vmatpush1.msra.mxu0 0.0
  %373 = vmatprep.subr.mxu0 0.0
  %374 = vmatpush1.msra.mxu0 0.0
  %375 = vmatprep.subr.mxu0 0.0
  %376 = vmatpush1.msra.mxu0 0.0
  %377 = vmatprep.subr.mxu0 0.0
  %378 = vmatpush1.msra.mxu0 0.0
  %379 = vmatprep.subr.mxu0 0.0
  %380 = vmatpush1.msra.mxu0 0.0
  %381 = vmatprep.subr.mxu0 0.0
  %382 = vmatpush1.msra.mxu0 0.0
  %383 = vmatprep.subr.mxu0 0.0
  %384 = vmatpush1.msra.mxu0 0.0
  %385 = vmatprep.subr.mxu0 0.0
  %386 = vmatpush1.msra.mxu0 0.0
  %387 = vmatprep.subr.mxu0 0.0
  %388 = vmatpush1.msra.mxu0 0.0
  %389 = vmatprep.subr.mxu0 0.0
  %390 = vmatpush1.msra.mxu0 0.0
  %391 = vmatprep.subr.mxu0 0.0
  %392 = vmatpush1.msra.mxu0 0.0
  %393 = vmatprep.subr.mxu0 0.0
  %394 = vmatpush1.msra.mxu0 0.0
  %395 = vmatprep.subr.mxu0 0.0
  %396 = vmatpush1.msra.mxu0 0.0
  %397 = vmatprep.subr.mxu0 0.0
  %398 = vmatpush1.msra.mxu0 0.0
  %399 = vmatprep.subr.mxu0 0.0
  %400 = vmatpush1.msra.mxu0 0.0
  %401 = vmatprep.subr.mxu0 0.0
  %402 = vmatpush1.msra.mxu0 0.0
  %403 = vmatprep.subr.mxu0 0.0
  %404 = vmatpush1.msra.mxu0 0.0
  %405 = vmatprep.subr.mxu0 0.0
  %406 = vmatpush1.msra.mxu0 0.0
  %407 = vmatprep.subr.mxu0 0.0
  %408 = vmatpush1.msra.mxu0 0.0
  %409 = vmatprep.subr.mxu0 0.0
  %410 = vmatpush1.msra.mxu0 0.0
  %411 = vmatprep.subr.mxu0 0.0
  %412 = vmatpush1.msra.mxu0 0.0
  %413 = vmatprep.subr.mxu0 0.0
  %414 = vmatpush1.msra.mxu0 0.0
  %415 = vmatprep.subr.mxu0 0.0
  %416 = vmatpush1.msra.mxu0 0.0
  %417 = vmatprep.subr.mxu0 0.0
  %418 = vmatpush1.msra.mxu0 0.0
  %419 = vmatprep.mubr.f32.mxu0 0.0
  %420 = vmatmul.mubr.f32.gmra.mrb[0].mxu0 %v55
  %v421 = vpop.f32.mrb[0].mxu0
  %v422 = vadd.f32 0.0, %v421
  %v423 = vpop.f32.mrb[0].mxu0
  %424 = vmatprep.mubr.f32.mxu0 0.0
  %425 = vmatmul.mubr.f32.gmra.mrb[0].mxu0 %v58
  %v426 = vpop.f32.mrb[0].mxu0
  %v427 = vadd.f32 0.0, %v426
  %v428 = vpop.f32.mrb[0].mxu0
  %429 = vdwg.mxu0
  %v430 = vmul.f32 %v422, %v138
  %v431 = vmul.f32 %v427, %v143
  %v432 = vadd.f32 %v430, %v150
  %v433 = vadd.f32 %v431, %v155
  %vm434 = vcmp.ge.f32.partialorder %v432, 0.0
  %vm435 = vcmp.ge.f32.partialorder %v433, 0.0
  %v436 = vmul.f32 %v432, 0.2
  %v437 = vmul.f32 %v433, 0.2
  %v438 = vsel %vm434, %v432, %v436
  %v439 = vsel %vm435, %v433, %v437
  %440 = vmatprep.subr.mxu0 0.0
  %441 = vmatpush1.msra.mxu0 %v438
  %442 = vmatprep.subr.mxu0 0.0
  %443 = vmatpush1.msra.mxu0 %v439
  %444 = vmatprep.subr.mxu0 0.0
  %445 = vmatpush1.msra.mxu0 0.0
  %446 = vmatprep.subr.mxu0 0.0
  %447 = vmatpush1.msra.mxu0 0.0
  %448 = vmatprep.subr.mxu0 0.0
  %449 = vmatpush1.msra.mxu0 0.0
  %450 = vmatprep.subr.mxu0 0.0
  %451 = vmatpush1.msra.mxu0 0.0
  %452 = vmatprep.subr.mxu0 0.0
  %453 = vmatpush1.msra.mxu0 0.0
  %454 = vmatprep.subr.mxu0 0.0
  %455 = vmatpush1.msra.mxu0 0.0
  %456 = vmatprep.subr.mxu0 0.0
  %457 = vmatpush1.msra.mxu0 0.0
  %458 = vmatprep.subr.mxu0 0.0
  %459 = vmatpush1.msra.mxu0 0.0
  %460 = vmatprep.subr.mxu0 0.0
  %461 = vmatpush1.msra.mxu0 0.0
  %462 = vmatprep.subr.mxu0 0.0
  %463 = vmatpush1.msra.mxu0 0.0
  %464 = vmatprep.subr.mxu0 0.0
  %465 = vmatpush1.msra.mxu0 0.0
  %466 = vmatprep.subr.mxu0 0.0
  %467 = vmatpush1.msra.mxu0 0.0
  %468 = vmatprep.subr.mxu0 0.0
  %469 = vmatpush1.msra.mxu0 0.0
  %470 = vmatprep.subr.mxu0 0.0
  %471 = vmatpush1.msra.mxu0 0.0
  %472 = vmatprep.subr.mxu0 0.0
  %473 = vmatpush1.msra.mxu0 0.0
  %474 = vmatprep.subr.mxu0 0.0
  %475 = vmatpush1.msra.mxu0 0.0
  %476 = vmatprep.subr.mxu0 0.0
  %477 = vmatpush1.msra.mxu0 0.0
  %478 = vmatprep.subr.mxu0 0.0
  %479 = vmatpush1.msra.mxu0 0.0
  %480 = vmatprep.subr.mxu0 0.0
  %481 = vmatpush1.msra.mxu0 0.0
  %482 = vmatprep.subr.mxu0 0.0
  %483 = vmatpush1.msra.mxu0 0.0
  %484 = vmatprep.subr.mxu0 0.0
  %485 = vmatpush1.msra.mxu0 0.0
  %486 = vmatprep.subr.mxu0 0.0
  %487 = vmatpush1.msra.mxu0 0.0
  %488 = vmatprep.subr.mxu0 0.0
  %489 = vmatpush1.msra.mxu0 0.0
  %490 = vmatprep.subr.mxu0 0.0
  %491 = vmatpush1.msra.mxu0 0.0
  %492 = vmatprep.subr.mxu0 0.0
  %493 = vmatpush1.msra.mxu0 0.0
  %494 = vmatprep.subr.mxu0 0.0
  %495 = vmatpush1.msra.mxu0 0.0
  %496 = vmatprep.subr.mxu0 0.0
  %497 = vmatpush1.msra.mxu0 0.0
  %498 = vmatprep.subr.mxu0 0.0
  %499 = vmatpush1.msra.mxu0 0.0
  %500 = vmatprep.subr.mxu0 0.0
  %501 = vmatpush1.msra.mxu0 0.0
  %502 = vmatprep.subr.mxu0 0.0
  %503 = vmatpush1.msra.mxu0 0.0
  %504 = vmatprep.mubr.f32.mxu0 0.0
  %505 = vmatmul.mubr.f32.gmra.mrb[0].mxu0 %v167
  %v506 = vpop.f32.mrb[0].mxu0
  %v507 = vadd.f32 0.0, %v506
  %v508 = vpop.f32.mrb[0].mxu0
  %509 = vmatprep.mubr.f32.mxu0 0.0
  %510 = vmatmul.mubr.f32.gmra.mrb[0].mxu0 %v170
  %v511 = vpop.f32.mrb[0].mxu0
  %v512 = vadd.f32 0.0, %v511
  %v513 = vpop.f32.mrb[0].mxu0
  %514 = vmatprep.mubr.f32.mxu0 0.0
  %515 = vmatmul.mubr.f32.gmra.mrb[0].mxu0 %v173
  %v516 = vpop.f32.mrb[0].mxu0
  %v517 = vadd.f32 0.0, %v516
  %v518 = vpop.f32.mrb[0].mxu0
  %519 = vmatprep.mubr.f32.mxu0 0.0
  %520 = vmatmul.mubr.f32.gmra.mrb[0].mxu0 %v176
  %v521 = vpop.f32.mrb[0].mxu0
  %v522 = vadd.f32 0.0, %v521
  %v523 = vpop.f32.mrb[0].mxu0
  %524 = vmatprep.mubr.f32.mxu0 0.0
  %525 = vmatmul.mubr.f32.gmra.mrb[0].mxu0 %v179
  %v526 = vpop.f32.mrb[0].mxu0
  %v527 = vadd.f32 0.0, %v526
  %v528 = vpop.f32.mrb[0].mxu0
  %529 = vmatprep.mubr.f32.mxu0 0.0
  %530 = vmatmul.mubr.f32.gmra.mrb[0].mxu0 %v182
  %v531 = vpop.f32.mrb[0].mxu0
  %v532 = vadd.f32 0.0, %v531
  %v533 = vpop.f32.mrb[0].mxu0
  %534 = vmatprep.mubr.f32.mxu0 0.0
  %535 = vmatmul.mubr.f32.gmra.mrb[0].mxu0 %v185
  %v536 = vpop.f32.mrb[0].mxu0
  %v537 = vadd.f32 0.0, %v536
  %v538 = vpop.f32.mrb[0].mxu0
  %539 = vmatprep.mubr.f32.mxu0 0.0
  %540 = vmatmul.mubr.f32.gmra.mrb[0].mxu0 %v188
  %v541 = vpop.f32.mrb[0].mxu0
  %v542 = vadd.f32 0.0, %v541
  %v543 = vpop.f32.mrb[0].mxu0
  %544 = vdwg.mxu0
  %s545 = scalar_lea.vmem %s1, 4
  %v546 = vld [vmem:[%s545] sm:$0xf]
  %v547 = vlaneseq
  %v548 = vshrl.u32 %v547, 7
  %v549 = vsub.s32 0, %v548
  %v550 = vrot.slane %v546, %v549
  %v551 = vmul.f32 %v507, %v550
  %v552 = vmul.f32 %v512, %v550
  %v553 = vlaneseq
  %v554 = vshrl.u32 %v553, 7
  %v555 = vsub.s32 1, %v554
  %v556 = vrot.slane %v546, %v555
  %v557 = vmul.f32 %v517, %v556
  %v558 = vmul.f32 %v522, %v556
  %v559 = vadd.f32 %v551, %v557
  %v560 = vadd.f32 %v552, %v558
  %v561 = vlaneseq
  %v562 = vshrl.u32 %v561, 7
  %v563 = vsub.s32 2, %v562
  %v564 = vrot.slane %v546, %v563
  %v565 = vmul.f32 %v527, %v564
  %v566 = vmul.f32 %v532, %v564
  %v567 = vadd.f32 %v559, %v565
  %v568 = vadd.f32 %v560, %v566
  %v569 = vlaneseq
  %v570 = vshrl.u32 %v569, 7
  %v571 = vsub.s32 3, %v570
  %v572 = vrot.slane %v546, %v571
  %v573 = vmul.f32 %v537, %v572
  %v574 = vmul.f32 %v542, %v572
  %v575 = vadd.f32 %v567, %v573
  %v576 = vadd.f32 %v568, %v574
  %v577 = vpack.c.bf16 %v576, %v575
  %v579 = vunpack.c.l.b16 %v577
  %v580 = vunpack.c.h.b16 %v577
  %v581 = vpack.c.b16 %v579, %v579
  %v582 = vpack.c.b16 %v580, %v580
  %s585 = scalar_lea.vmem %s6, 8
  %586 = vst [vmem:[%s585] sm:$0xf] %v581
  %587 = vst [vmem:[%s585 + $0x4] sm:$0xf] %v582
  %588 = vadd.xlane.f32.xlu0 %v575
  %v589 = vpop.xlane.xlu0 %588
  %590 = vadd.xlane.f32.xlu0 %v576
  %v591 = vpop.xlane.xlu0 %590
  %v592 = vadd.f32 %v340, %v589
  %v593 = vadd.f32 %v341, %v591
  %v594 = vmul.f32 %v575, %v575
  %v595 = vmul.f32 %v576, %v576
  %596 = vadd.xlane.f32.xlu0 %v594
  %v597 = vpop.xlane.xlu0 %596
  %598 = vadd.xlane.f32.xlu0 %v595
  %v599 = vpop.xlane.xlu0 %598
  %v600 = vadd.f32 %v348, %v597
  %v601 = vadd.f32 %v349, %v599
  %v602 = vld [vmem:[%s7] sm:$0xff]
  %v603 = vld [vmem:[%s7 + $0x8] sm:$0xff]
  %v604 = vadd.f32 %v602, %v592
  %v605 = vadd.f32 %v603, %v593
  %vm606 = vcmask 7168
  %607 = vst.msk [vmem:[%s7] sm:$0xff] %vm606, %v604
  %608 = vst.msk [vmem:[%s7 + $0x8] sm:$0xff] %vm606, %v605
  %v609 = vld [vmem:[%s8] sm:$0xff]
  %v610 = vld [vmem:[%s8 + $0x8] sm:$0xff]
  %v611 = vadd.f32 %v609, %v600
  %v612 = vadd.f32 %v610, %v601
  %613 = vst.msk [vmem:[%s8] sm:$0xff] %vm606, %v611
  %614 = vst.msk [vmem:[%s8 + $0x8] sm:$0xff] %vm606, %v612
  // Predicated region
  $region30: #{adaptive_conv.4} parent=0 // pred_check
    _
  $region31: #{adaptive_conv.4} parent=0 // pred_check_branch
    %616 = sbr.rel (0) target = $region33
  $region32: #{adaptive_conv.4} parent=0 // pred_region
    _
  $region33: #{adaptive_conv.4} parent=0 // pred_fallthru
    _
  // Predicated region
  $region34: #{adaptive_conv.4} parent=0 // pred_check
    _
  $region35: #{adaptive_conv.4} parent=0 // pred_check_branch
    %618 = sbr.rel (0) target = $region37
  $region36: #{adaptive_conv.4} parent=0 // pred_region
    _
  $region37: #{adaptive_conv.4} parent=0 // pred_fallthru
    _
  // Predicated region
  $region38: #{adaptive_conv.4} parent=0 // pred_check
    _
  $region39: #{adaptive_conv.4} parent=0 // pred_check_branch
    %620 = sbr.rel (0) target = $region41
  $region40: #{adaptive_conv.4} parent=0 // pred_region
    _
  $region41: #{adaptive_conv.4} parent=0 // pred_fallthru
    _
  // Predicated region
  $region42: #{adaptive_conv.4} parent=0 // pred_check
    _
  $region43: #{adaptive_conv.4} parent=0 // pred_check_branch
    %622 = sbr.rel (0) target = $region45
  $region44: #{adaptive_conv.4} parent=0 // pred_region
    _
  $region45: #{adaptive_conv.4} parent=0 // pred_fallthru
    _
  // Predicated region
  $region46: #{adaptive_conv.4} parent=0 // pred_check
    _
  $region47: #{adaptive_conv.4} parent=0 // pred_check_branch
    %624 = sbr.rel (0) target = $region49
  $region48: #{adaptive_conv.4} parent=0 // pred_region
    _
  $region49: #{adaptive_conv.4} parent=0 // pred_fallthru
    _
  // Predicated region
  $region50: #{adaptive_conv.4} parent=0 // pred_check
    _
  $region51: #{adaptive_conv.4} parent=0 // pred_check_branch
    %626 = sbr.rel (0) target = $region53
  $region52: #{adaptive_conv.4} parent=0 // pred_region
    _
  $region53: #{adaptive_conv.4} parent=0 // pred_fallthru
    _

</llo_original>
